<compile_context>
chip_gen: v5e
topology: v5e:2x2
jax: 0.10.0
libtpu: 0.0.40
codegen_flags: <defaults>
</compile_context>

<pallas_src>
import jax
import jax.numpy as jnp
from jax import lax
from jax.experimental import pallas as pl
from jax.experimental.pallas import tpu as pltpu

_CHUNK = 128  # rows processed per in-kernel step; also the x-lane alignment.


def _cdiv(a, b):
    return -(-a // b)


def _round_up(a, b):
    return _cdiv(a, b) * b


def spe_kernel(tab_ref, x_ref, o_ref):
    """One grid step: rows [i*tile_n, (i+1)*tile_n) of the embedding.

    tab_ref : (2, dim) resident table.  Row 0 = scale*freqs with the half-table
              repeated into the cos lanes; row 1 = phase (0 | pi/2).
    x_ref   : (1, tile_n) lane-major timesteps for this tile (zero padded).
    o_ref   : (tile_n, dim) output tile.
    """
    tile_n, dim = o_ref.shape

    # Hoisted constants (JAX does not CSE broadcast_in_dim across the loop).
    f_b = jnp.broadcast_to(tab_ref[0:1, :], (_CHUNK, dim))    # scale*freqs
    ph_b = jnp.broadcast_to(tab_ref[1:2, :], (_CHUNK, dim))   # 0 | pi/2
    rows = lax.broadcasted_iota(jnp.int32, (_CHUNK, _CHUNK), 0)
    cols = lax.broadcasted_iota(jnp.int32, (_CHUNK, _CHUNK), 1)
    eye = rows == cols

    # Static, short trip count (<= tile_cap/128): keep it unrolled for the
    # LLO scheduler.
    for j in range(tile_n // _CHUNK):
        lo = j * _CHUNK
        xs = x_ref[:, lo:lo + _CHUNK]                          # (1, 128) lanes
        # Lane -> sublane: select the diagonal and reduce over lanes (exact,
        # since 127 of the 128 summands are literal zeros).  XLU reduce is a
        # free slot in this kernel.
        x_col = jnp.sum(jnp.where(eye, xs, 0.0), axis=1, keepdims=True)  # (128,1)
        ang = x_col * f_b + ph_b                               # (128, dim)
        o_ref[lo:lo + _CHUNK, :] = jnp.sin(ang).astype(o_ref.dtype)


def spe(x, dim=128, max_positions=10000, scale=1000, tile_n=None,
        out_dtype=jnp.float32):
    """x: (N,) -> (N, dim) sinusoidal positional embedding (float32 by default).

    Set out_dtype=jnp.bfloat16 on write-bound parts (v5e) if the consumer
    accepts it; the angle math stays in float32 either way.
    """
    assert dim % 2 == 0 and dim >= 4, "dim must be even and >= 4"
    N = int(x.shape[0])
    half = dim // 2

    # ---- tile policy -------------------------------------------------------
    # tile_n must be a multiple of 128 (lane-major x tile).  Cap at 2048 rows
    # and balance tiles; force >= 2 grid steps once there is enough work so
    # both TensorCores are used on v7x.
    if tile_n is None:
        cap = 2048
        num_tiles = _cdiv(N, cap)
        if num_tiles < 2 and N >= 1024:
            num_tiles = 2
        tile_n = min(_round_up(_cdiv(N, num_tiles), _CHUNK),
                     _round_up(N, _CHUNK))
    assert tile_n % _CHUNK == 0, "tile_n must be a multiple of 128"
    grid_n = _cdiv(N, tile_n)
    n_pad = grid_n * tile_n  # rows actually computed; extras sliced off below.

    # ---- host-side constants ----------------------------------------------
    # Lane-major, zero-padded timesteps: dense in HBM and a tiny VMEM block.
    x_f = x.astype(jnp.float32).reshape(N)
    x_lanes = jnp.pad(x_f, (0, n_pad - N)).reshape(1, n_pad)

    k = jnp.arange(half, dtype=jnp.float32) / float(half - 1)
    f = (1.0 / float(max_positions)) ** k
    f = float(scale) * f                                    # fold scale in
    freqs_row = jnp.concatenate([f, f])                     # cos half repeats
    phase_row = jnp.concatenate([jnp.zeros((half,), jnp.float32),
                                 jnp.full((half,), jnp.pi / 2, jnp.float32)])
    tab = jnp.stack([freqs_row, phase_row])                 # (2, dim)

    out = pl.pallas_call(
        spe_kernel,
        out_shape=jax.ShapeDtypeStruct((n_pad, dim), out_dtype),
        grid=(grid_n,),
        in_specs=[
            pl.BlockSpec((2, dim), lambda i: (0, 0)),        # resident table
            pl.BlockSpec((1, tile_n), lambda i: (0, i)),     # lane-major x tile
        ],
        out_specs=pl.BlockSpec((tile_n, dim), lambda i: (i, 0)),
        compiler_params=pltpu.CompilerParams(
            dimension_semantics=("parallel",)),              # rows independent
    )(tab, x_lanes)

    return out if n_pad == N else out[:N]


def spe_ref(x, dim=128, max_positions=10000, scale=1000):
    """Pure-JAX reference mirroring the PyTorch forward."""
    half = dim // 2
    xs = scale * x.astype(jnp.float32)
    freqs = jnp.arange(half, dtype=jnp.float32) / (half - 1)
    freqs = (1.0 / max_positions) ** freqs
    ang = xs[:, None] * freqs[None, :]
    return jnp.concatenate([jnp.sin(ang), jnp.cos(ang)], axis=-1)


if __name__ == "__main__":
    dim = 128
    key = jax.random.PRNGKey(0)
    k1, k2, k3 = jax.random.split(key, 3)

    # Angles reach ~scale*max(x) ~= 1e3, where f32 argument rounding alone
    # gives O(1e-4) differences between any two correct sin implementations.
    tol = 2e-3

    # Case 1: typical diffusion-timestep batch (single tile, N not 8-aligned
    # to the 128-row tile -> padded rows exercised).
    x1 = jax.random.uniform(k1, (8,), dtype=jnp.float32)
    out1 = jax.block_until_ready(spe(x1, dim=dim))
    ref1 = spe_ref(x1, dim=dim)
    assert out1.shape == (8, dim) and out1.dtype == jnp.float32
    err1 = float(jnp.max(jnp.abs(out1 - ref1)))
    assert err1 < tol, f"case1 max err {err1}"

    # Case 2: explicit small tile -> multi-tile grid with a padded last tile.
    x2 = jax.random.uniform(k2, (200,), dtype=jnp.float32)
    out2 = jax.block_until_ready(spe(x2, dim=dim, tile_n=128))
    ref2 = spe_ref(x2, dim=dim)
    assert out2.shape == (200, dim)
    err2 = float(jnp.max(jnp.abs(out2 - ref2)))
    assert err2 < tol, f"case2 max err {err2}"

    # Case 3: default tile policy choosing >= 2 balanced tiles (megacore path).
    x3 = jax.random.uniform(k3, (1300,), dtype=jnp.float32)
    out3 = jax.block_until_ready(spe(x3, dim=dim))
    ref3 = spe_ref(x3, dim=dim)
    assert out3.shape == (1300, dim)
    err3 = float(jnp.max(jnp.abs(out3 - ref3)))
    assert err3 < tol, f"case3 max err {err3}"

    print("KERNEL_OK")
</pallas_src>

<mosaic_0001>
module attributes {stable_mosaic.version = 11 : i64} {
  func.func @spe_kernel(%arg0: i32, %arg1: memref<2x128xf32, #tpu.memory_space<vmem>>, %arg2: memref<1x128xf32, #tpu.memory_space<vmem>>, %arg3: memref<128x128xf32, #tpu.memory_space<vmem>>) attributes {dimension_semantics = [#tpu.dimension_semantics<parallel>], iteration_bounds = array<i64: 1>, scalar_prefetch = 0 : i64, scratch_operands = 0 : i64, tpu.core_type = #tpu.core_type<tc>, window_params = [{pipeline_mode = #tpu.pipeline_mode<synchronous>, transform_indices = @transform_0, window_bounds = array<i64: 2, 128>}, {transform_indices = @transform_1, window_bounds = array<i64: 1, 128>}, {transform_indices = @transform_2, window_bounds = array<i64: 128, 128>}]} {
    %c0 = arith.constant 0 : index
    %c0_0 = arith.constant 0 : index
    %0 = vector.load %arg1[%c0, %c0_0] : memref<2x128xf32, #tpu.memory_space<vmem>>, vector<1x128xf32>
    %1 = vector.shape_cast %0 : vector<1x128xf32> to vector<1x128xf32>
    %2 = vector.broadcast %1 : vector<1x128xf32> to vector<128x128xf32>
    %c1 = arith.constant 1 : index
    %c0_1 = arith.constant 0 : index
    %3 = vector.load %arg1[%c1, %c0_1] : memref<2x128xf32, #tpu.memory_space<vmem>>, vector<1x128xf32>
    %4 = vector.shape_cast %3 : vector<1x128xf32> to vector<1x128xf32>
    %5 = vector.broadcast %4 : vector<1x128xf32> to vector<128x128xf32>
    %6 = tpu.iota {dimensions = array<i32: 0>} : vector<128x128xi32>
    %7 = tpu.iota {dimensions = array<i32: 1>} : vector<128x128xi32>
    %8 = arith.cmpi eq, %6, %7 : vector<128x128xi32>
    %c0_2 = arith.constant 0 : index
    %c0_3 = arith.constant 0 : index
    %9 = vector.load %arg2[%c0_2, %c0_3] : memref<1x128xf32, #tpu.memory_space<vmem>>, vector<1x128xf32>
    %cst = arith.constant 0.000000e+00 : f32
    %10 = vector.shape_cast %9 : vector<1x128xf32> to vector<1x128xf32>
    %11 = vector.broadcast %10 : vector<1x128xf32> to vector<128x128xf32>
    %12 = vector.broadcast %cst : f32 to vector<128x128xf32>
    %13 = arith.select %8, %11, %12 : vector<128x128xi1>, vector<128x128xf32>
    %cst_4 = arith.constant dense<0.000000e+00> : vector<128xf32>
    %14 = vector.multi_reduction <add>, %13, %cst_4 [1] : vector<128x128xf32> to vector<128xf32>
    %15 = vector.shape_cast %14 : vector<128xf32> to vector<128x1xf32>
    %16 = vector.broadcast %15 : vector<128x1xf32> to vector<128x128xf32>
    %17 = arith.mulf %16, %2 : vector<128x128xf32>
    %18 = arith.addf %17, %5 : vector<128x128xf32>
    %19 = math.sin %18 : vector<128x128xf32>
    %c0_5 = arith.constant 0 : index
    %c0_6 = arith.constant 0 : index
    %20 = vector.load %arg3[%c0_5, %c0_6] : memref<128x128xf32, #tpu.memory_space<vmem>>, vector<128x128xf32>
    tpu.vector_store %arg3[%c0_5, %c0_6], %19 {strides = array<i32>} : memref<128x128xf32, #tpu.memory_space<vmem>>, vector<128x128xf32>,
    return
  }
  func.func @transform_0(%arg0: i32) -> (i32, i32) {
    %c0_i32 = arith.constant 0 : i32
    %c0_i32_0 = arith.constant 0 : i32
    %c0_i32_1 = arith.constant 0 : i32
    return %c0_i32, %c0_i32_0 : i32, i32
  }
  func.func @transform_1(%arg0: i32) -> (i32, i32) {
    %c0_i32 = arith.constant 0 : i32
    %c0_i32_0 = arith.constant 0 : i32
    return %c0_i32, %arg0 : i32, i32
  }
  func.func @transform_2(%arg0: i32) -> (i32, i32) {
    %c0_i32 = arith.constant 0 : i32
    %c0_i32_0 = arith.constant 0 : i32
    return %arg0, %c0_i32 : i32, i32
  }
}

</mosaic_0001>

<llo_original>
// kernel: tpu_custom_call.1
$region0: #{tpu_custom_call.1}
  #allocation0 [shape = 'u32[]', space=smem, size = 0x4, offset = 0x4, fixed_abs, tag = 'smem constant byte address 0x4 - core index']
  #allocation1 [shape = 'u32[72,128]{1,0:T(1,128)}', space=vmem, size = 0x9000, scoped, tag = 'internal scratch']
  %s0 = inlined_call_operand.hbm [shape: f32[2,128], index: 0, kind: input, shape index: {}]
  %s1 = inlined_call_operand.hbm [shape: f32[1,128], index: 1, kind: input, shape index: {}]
  %s2 = inlined_call_operand.hbm [shape: f32[128,128], index: 2, kind: output, shape index: {}]
  %s3 = sld [smem:[#allocation0]]
  $region26: #{tpu_custom_call.1} parent=0
    _
  %s5 = ssub.s32 1, %s3
  %s6 = scalar_select 0, %s5, %s3
  $region1: #{tpu_custom_call.1} parent=0
    #allocation2 [shape = 'u8[1024]{0}', space=vmem, size = 0x400, scoped, tag = 'input window, operand 0, single buffered']
    #allocation3 [shape = 's32[1]{0}', space=sflag, size = 0x4, scoped, tag = 'scoped memory for tpu_custom_call.1']
    #allocation4 [shape = 's32[1]{0}', space=sflag, size = 0x4, scoped, tag = 'scoped memory for tpu_custom_call.1']
    #allocation5 [shape = 'u8[512]{0}', space=vmem, size = 0x400, scoped, tag = 'input window, operand 1, single buffered']
    #allocation6 [shape = 's32[1]{0}', space=sflag, size = 0x4, scoped, tag = 'scoped memory for tpu_custom_call.1']
    #allocation7 [shape = 'u8[65536]{0}', space=vmem, size = 0x10000, scoped, tag = 'output window, operand 0, single buffered']
    %7 = vsyncpa [#allocation3], 0
    %8 = vsyncpa [#allocation6], 0
    %9 = vsyncpa [#allocation4], 0
    // Predicated region
    $region2: #{tpu_custom_call.1} parent=1 // pred_check
      _
    $region3: #{tpu_custom_call.1} parent=1 // pred_check_branch
      %11 = sbr.rel (0) target = $region5
    $region4: #{tpu_custom_call.1} parent=1 // pred_region
      %13 = vsyncadd [#allocation3], 0
      %s15 = sshll.u32 %s0, 4
      %s16 = int_to_ptr.hbm [resolvable:$true] %s15
      %s17 = sshll.u32 [#allocation2], 4
      %s18 = int_to_ptr.vmem [resolvable:$true] %s17
      %20 = dma.hbm_to_vmem [thread:$0]  %s16, 32, %s18, [#allocation3]
    $region5: #{tpu_custom_call.1} parent=1 // pred_fallthru
      _
    // Predicated region
    $region6: #{tpu_custom_call.1} parent=1 // pred_check
      _
    $region7: #{tpu_custom_call.1} parent=1 // pred_check_branch
      %22 = sbr.rel (0) target = $region9
    $region8: #{tpu_custom_call.1} parent=1 // pred_region
      %24 = vsyncadd [#allocation6], 0
      %s26 = sshll.u32 %s1, 4
      %s27 = int_to_ptr.hbm [resolvable:$true] %s26
      %s28 = sshll.u32 [#allocation5], 4
      %s29 = int_to_ptr.vmem [resolvable:$true] %s28
      %31 = dma.hbm_to_vmem [thread:$0]  %s27, 16, %s29, [#allocation6]
    $region9: #{tpu_custom_call.1} parent=1 // pred_fallthru
      _
    // Predicated region
    $region10: #{tpu_custom_call.1} parent=1 // pred_check
      _
    $region11: #{tpu_custom_call.1} parent=1 // pred_check_branch
      %33 = sbr.rel (0) target = $region13
    $region12: #{tpu_custom_call.1} parent=1 // pred_region
      %35 = dma.done [#allocation3], 32
    $region13: #{tpu_custom_call.1} parent=1 // pred_fallthru
      _
    // Predicated region
    $region14: #{tpu_custom_call.1} parent=1 // pred_check
      _
    $region15: #{tpu_custom_call.1} parent=1 // pred_check_branch
      %37 = sbr.rel (0) target = $region17
    $region16: #{tpu_custom_call.1} parent=1 // pred_region
      %39 = dma.done [#allocation6], 16
    $region17: #{tpu_custom_call.1} parent=1 // pred_fallthru
      _
    %v40 = vld [vmem:[#allocation2] sm:$0x1]
    %v41 = vperm.slane %v40, 0
    %v42 = vld [vmem:[#allocation2 + $0x1] sm:$0x1]
    %v43 = vperm.slane %v42, 0
    %v44 = vlaneseq
    %v45 = vshrl.u32 %v44, 7
    %v46 = vadd.s32 %v45, 8
    %v47 = vadd.s32 %v45, 16
    %v48 = vadd.s32 %v45, 24
    %v49 = vadd.s32 %v45, 32
    %v50 = vadd.s32 %v45, 40
    %v51 = vadd.s32 %v45, 48
    %v52 = vadd.s32 %v45, 56
    %v53 = vadd.s32 %v45, 64
    %v54 = vadd.s32 %v45, 72
    %v55 = vadd.s32 %v45, 80
    %v56 = vadd.s32 %v45, 88
    %v57 = vadd.s32 %v45, 96
    %v58 = vadd.s32 %v45, 104
    %v59 = vadd.s32 %v45, 112
    %v60 = vadd.s32 %v45, 120
    %v61 = vlaneseq
    %v62 = vand.u32 %v61, 127
    %vm63 = vcmp.eq.s32.totalorder %v45, %v62
    %vm64 = vcmp.eq.s32.totalorder %v46, %v62
    %vm65 = vcmp.eq.s32.totalorder %v47, %v62
    %vm66 = vcmp.eq.s32.totalorder %v48, %v62
    %vm67 = vcmp.eq.s32.totalorder %v49, %v62
    %vm68 = vcmp.eq.s32.totalorder %v50, %v62
    %vm69 = vcmp.eq.s32.totalorder %v51, %v62
    %vm70 = vcmp.eq.s32.totalorder %v52, %v62
    %vm71 = vcmp.eq.s32.totalorder %v53, %v62
    %vm72 = vcmp.eq.s32.totalorder %v54, %v62
    %vm73 = vcmp.eq.s32.totalorder %v55, %v62
    %vm74 = vcmp.eq.s32.totalorder %v56, %v62
    %vm75 = vcmp.eq.s32.totalorder %v57, %v62
    %vm76 = vcmp.eq.s32.totalorder %v58, %v62
    %vm77 = vcmp.eq.s32.totalorder %v59, %v62
    %vm78 = vcmp.eq.s32.totalorder %v60, %v62
    %v79 = vld [vmem:[#allocation5] sm:$0x1]
    %v81 = vperm.slane %v79, 0
    %v83 = vsel %vm63, %v81, 0.0
    %v84 = vsel %vm64, %v81, 0.0
    %v85 = vsel %vm65, %v81, 0.0
    %v86 = vsel %vm66, %v81, 0.0
    %v87 = vsel %vm67, %v81, 0.0
    %v88 = vsel %vm68, %v81, 0.0
    %v89 = vsel %vm69, %v81, 0.0
    %v90 = vsel %vm70, %v81, 0.0
    %v91 = vsel %vm71, %v81, 0.0
    %v92 = vsel %vm72, %v81, 0.0
    %v93 = vsel %vm73, %v81, 0.0
    %v94 = vsel %vm74, %v81, 0.0
    %v95 = vsel %vm75, %v81, 0.0
    %v96 = vsel %vm76, %v81, 0.0
    %v97 = vsel %vm77, %v81, 0.0
    %v98 = vsel %vm78, %v81, 0.0
    %99 = vadd.xlane.f32.xlu0 %v83
    %v100 = vpop.xlane.xlu0 %99
    %101 = vadd.xlane.f32.xlu0 %v84
    %v102 = vpop.xlane.xlu0 %101
    %103 = vadd.xlane.f32.xlu0 %v85
    %v104 = vpop.xlane.xlu0 %103
    %105 = vadd.xlane.f32.xlu0 %v86
    %v106 = vpop.xlane.xlu0 %105
    %107 = vadd.xlane.f32.xlu0 %v87
    %v108 = vpop.xlane.xlu0 %107
    %109 = vadd.xlane.f32.xlu0 %v88
    %v110 = vpop.xlane.xlu0 %109
    %111 = vadd.xlane.f32.xlu0 %v89
    %v112 = vpop.xlane.xlu0 %111
    %113 = vadd.xlane.f32.xlu0 %v90
    %v114 = vpop.xlane.xlu0 %113
    %115 = vadd.xlane.f32.xlu0 %v91
    %v116 = vpop.xlane.xlu0 %115
    %117 = vadd.xlane.f32.xlu0 %v92
    %v118 = vpop.xlane.xlu0 %117
    %119 = vadd.xlane.f32.xlu0 %v93
    %v120 = vpop.xlane.xlu0 %119
    %121 = vadd.xlane.f32.xlu0 %v94
    %v122 = vpop.xlane.xlu0 %121
    %123 = vadd.xlane.f32.xlu0 %v95
    %v124 = vpop.xlane.xlu0 %123
    %125 = vadd.xlane.f32.xlu0 %v96
    %v126 = vpop.xlane.xlu0 %125
    %127 = vadd.xlane.f32.xlu0 %v97
    %v128 = vpop.xlane.xlu0 %127
    %129 = vadd.xlane.f32.xlu0 %v98
    %v130 = vpop.xlane.xlu0 %129
    %v131 = vmul.f32 %v100, %v41
    %v132 = vmul.f32 %v102, %v41
    %v133 = vmul.f32 %v104, %v41
    %v134 = vmul.f32 %v106, %v41
    %v135 = vmul.f32 %v108, %v41
    %v136 = vmul.f32 %v110, %v41
    %v137 = vmul.f32 %v112, %v41
    %v138 = vmul.f32 %v114, %v41
    %v139 = vmul.f32 %v116, %v41
    %v140 = vmul.f32 %v118, %v41
    %v141 = vmul.f32 %v120, %v41
    %v142 = vmul.f32 %v122, %v41
    %v143 = vmul.f32 %v124, %v41
    %v144 = vmul.f32 %v126, %v41
    %v145 = vmul.f32 %v128, %v41
    %v146 = vmul.f32 %v130, %v41
    %v147 = vadd.f32 %v131, %v43
    %v148 = vadd.f32 %v132, %v43
    %v149 = vadd.f32 %v133, %v43
    %v150 = vadd.f32 %v134, %v43
    %v151 = vadd.f32 %v135, %v43
    %v152 = vadd.f32 %v136, %v43
    %v153 = vadd.f32 %v137, %v43
    %v154 = vadd.f32 %v138, %v43
    %v155 = vadd.f32 %v139, %v43
    %v156 = vadd.f32 %v140, %v43
    %v157 = vadd.f32 %v141, %v43
    %v158 = vadd.f32 %v142, %v43
    %v159 = vadd.f32 %v143, %v43
    %v160 = vadd.f32 %v144, %v43
    %v161 = vadd.f32 %v145, %v43
    %v162 = vadd.f32 %v146, %v43
    %v163 = vand.u32 2147483647, %v147
    %vm164 = vcmp.le.f32.partialorder %v163, 0.7853982
    %vm165 = vcmp.lt.s32.totalorder %v147, 0
    %v166 = vand.u32 %v147, 2139095040
    %v167 = vshrl.u32 %v166, 23
    %v168 = vsub.s32 %v167, 127
    %v169 = vand.u32 2147483647, %v147
    %v170 = vand.u32 %v169, 8388607
    %v171 = vor.u32 %v170, 8388608
    %v172 = vsub.s32 0, %v171
    %v173 = vadd.s32 %v168, 1
    %vm174 = vcmp.gt.s32.totalorder %v173, 0
    %v175 = vsel %vm174, %v173, 0
    %v176 = vshrl.u32 %v175, 5
    %v177 = vand.u32 %v175, 31
    %v178 = vsub.s32 32, %v177
    %v179 = vshrl.u32 683565275, %v178
    %v180 = vshll.u32 683565275, %v177
    %v181 = vshrl.u32 2475754826, %v178
    %v182 = vor.u32 %v180, %v181
    %v183 = vshll.u32 2475754826, %v177
    %v184 = vshrl.u32 2131351028, %v178
    %v185 = vor.u32 %v183, %v184
    %v186 = vshll.u32 2131351028, %v177
    %v187 = vshrl.u32 2102212464, %v178
    %v188 = vor.u32 %v186, %v187
    %v189 = vshll.u32 2102212464, %v177
    %v190 = vshrl.u32 920167782, %v178
    %v191 = vor.u32 %v189, %v190
    %v192 = vshll.u32 920167782, %v177
    %v193 = vshrl.u32 1326507024, %v178
    %v194 = vor.u32 %v192, %v193
    %vm195 = vcmp.lt.s32.totalorder %v176, 1
    %vm196 = vcmp.lt.s32.totalorder %v176, 2
    %vm197 = vcmp.lt.s32.totalorder %v176, 3
    %vm198 = vcmp.lt.s32.totalorder %v176, 4
    %v199 = vsel %vm195, %v179, %v182
    %v200 = vsel %vm198, %v188, 2102212464
    %v201 = vsel %vm197, %v185, %v200
    %v202 = vsel %vm196, %v199, %v201
    %v203 = vsel %vm195, %v182, %v185
    %v204 = vsel %vm198, %v191, 920167782
    %v205 = vsel %vm197, %v188, %v204
    %v206 = vsel %vm196, %v203, %v205
    %v207 = vsel %vm195, %v185, %v188
    %v208 = vsel %vm198, %v194, 1326507024
    %v209 = vsel %vm197, %v191, %v208
    %v210 = vsel %vm196, %v207, %v209
    %v211 = vshll.u32 %v171, 8
    %v212 = vand.u32 %v211, 65535
    %v213 = vshrl.u32 %v211, 16
    %v214 = vand.u32 %v210, 65535
    %v215 = vshrl.u32 %v210, 16
    %v216 = vmul.u32 %v212, %v214
    %v217 = vmul.u32 %v212, %v215
    %v218 = vmul.u32 %v213, %v214
    %v219 = vmul.u32 %v213, %v215
    %v220 = vshll.u32 %v217, 16
    %v221 = vshrl.u32 %v217, 16
    %v222 = vshll.u32 %v218, 16
    %v223 = vshrl.u32 %v218, 16
    %vm224 = vc.u32 %v216, %v220
    %v225 = vsel %vm224, 1, 0
    %v226 = vadd.s32 %v216, %v220
    %v227 = vadd.s32 %v219, %v225
    %vm228 = vc.u32 %v226, %v222
    %v229 = vsel %vm228, 1, 0
    %v230 = vadd.s32 %v226, %v222
    %v231 = vadd.s32 %v227, %v229
    %v232 = vadd.s32 %v231, %v221
    %v233 = vadd.s32 %v232, %v223
    %v234 = vand.u32 %v211, 65535
    %v235 = vshrl.u32 %v211, 16
    %v236 = vand.u32 %v206, 65535
    %v237 = vshrl.u32 %v206, 16
    %v238 = vmul.u32 %v234, %v236
    %v239 = vmul.u32 %v234, %v237
    %v240 = vmul.u32 %v235, %v236
    %v241 = vmul.u32 %v235, %v237
    %v242 = vshll.u32 %v239, 16
    %v243 = vshrl.u32 %v239, 16
    %v244 = vshll.u32 %v240, 16
    %v245 = vshrl.u32 %v240, 16
    %vm246 = vc.u32 %v238, %v242
    %v247 = vsel %vm246, 1, 0
    %v248 = vadd.s32 %v238, %v242
    %v249 = vadd.s32 %v241, %v247
    %vm250 = vc.u32 %v248, %v244
    %v251 = vsel %vm250, 1, 0
    %v252 = vadd.s32 %v248, %v244
    %v253 = vadd.s32 %v249, %v251
    %v254 = vadd.s32 %v253, %v243
    %v255 = vadd.s32 %v254, %v245
    %v256 = vmul.u32 %v211, %v202
    %v257 = vadd.s32 %v233, %v252
    %vm258 = vc.u32 %v233, %v252
    %v259 = vadd.s32 %v255, 1
    %v260 = vsel %vm258, %v259, %v255
    %v261 = vadd.s32 %v256, %v260
    %v262 = vadd.s32 %v261, 536870912
    %v263 = vshrl.u32 %v262, 30
    %v264 = vshll.u32 %v263, 30
    %v265 = vsub.s32 %v261, %v264
    %vm266 = vcmp.lt.s32.totalorder %v265, 0
    %v267 = vsub.s32 0, %v265
    %v268 = vsel %vm266, %v267, %v265
    %v269 = vclz %v268
    %v270 = vsub.s32 %v269, 2
    %vm271 = vcmp.gt.s32.totalorder 0, %v270
    %v272 = vsel %vm271, 0, %v270
    %v273 = vsub.s32 32, %v272
    %v274 = vshll.u32 %v265, %v272
    %v275 = vshrl.u32 %v257, %v273
    %v276 = vor.u32 %v274, %v275
    %v277 = vsub.s32 4294967266, %v272
    %v278 = vadd.s32 %v277, 127
    %v279 = vshll.u32 %v278, 23
    %v280 = vor.u32 4788187, %v279
    %v281 = vand.u32 2147483647, %v280
    %v283 = vcvt.s32.f32 %v276
    %v284 = vmul.f32 %v283, %v281
    %v285 = vxor.u32 %v284, 2147483648
    %v286 = vsel %vm165, %v285, %v284
    %v287 = vsub.s32 4, %v263
    %v288 = vsel %vm165, %v287, %v263
    %v289 = vsel %vm164, %v147, %v286
    %v290 = vsel %vm164, 0, %v288
    %v291 = vmul.f32 %v289, %v289
    %v292 = vmul.f32 %v291, -0.001358992
    %v293 = vadd.f32 %v292, 0.041655596
    %v294 = vmul.f32 %v291, %v293
    %v295 = vadd.f32 %v294, -0.4999988
    %v296 = vmul.f32 %v291, %v295
    %v297 = vadd.f32 1.0, %v296
    %v298 = vmul.f32 %v289, %v289
    %v299 = vmul.f32 %v298, -0.00019511016
    %v300 = vadd.f32 %v299, 0.008332121
    %v301 = vmul.f32 %v298, %v300
    %v302 = vadd.f32 %v301, -0.16666654
    %v303 = vmul.f32 %v298, %v302
    %v304 = vadd.f32 %v303, 1.0
    %v305 = vmul.f32 %v304, %v289
    %vm306 = vweird.f32 %v147
    %v307 = vadd.s32 %v290, 3
    %v308 = vand.u32 %v307, 3
    %vm309 = vcmp.lt.s32.totalorder %v308, 2
    %vm310 = vcmp.eq.s32.totalorder %v308, 0
    %v311 = vxor.u32 %v305, 2147483648
    %v312 = vsel %vm310, %v297, %v311
    %vm313 = vcmp.eq.s32.totalorder %v308, 2
    %v314 = vxor.u32 %v297, 2147483648
    %v315 = vsel %vm313, %v314, %v305
    %v316 = vsel %vm309, %v312, %v315
    %v317 = vsel %vm306, nan, %v316
    %v318 = vand.u32 2147483647, %v148
    %vm319 = vcmp.le.f32.partialorder %v318, 0.7853982
    %vm320 = vcmp.lt.s32.totalorder %v148, 0
    %v321 = vand.u32 %v148, 2139095040
    %v322 = vshrl.u32 %v321, 23
    %v323 = vsub.s32 %v322, 127
    %v324 = vand.u32 2147483647, %v148
    %v325 = vand.u32 %v324, 8388607
    %v326 = vor.u32 %v325, 8388608
    %v327 = vsub.s32 0, %v326
    %v328 = vadd.s32 %v323, 1
    %vm329 = vcmp.gt.s32.totalorder %v328, 0
    %v330 = vsel %vm329, %v328, 0
    %v331 = vshrl.u32 %v330, 5
    %v332 = vand.u32 %v330, 31
    %v333 = vsub.s32 32, %v332
    %v334 = vshrl.u32 683565275, %v333
    %v335 = vshll.u32 683565275, %v332
    %v336 = vshrl.u32 2475754826, %v333
    %v337 = vor.u32 %v335, %v336
    %v338 = vshll.u32 2475754826, %v332
    %v339 = vshrl.u32 2131351028, %v333
    %v340 = vor.u32 %v338, %v339
    %v341 = vshll.u32 2131351028, %v332
    %v342 = vshrl.u32 2102212464, %v333
    %v343 = vor.u32 %v341, %v342
    %v344 = vshll.u32 2102212464, %v332
    %v345 = vshrl.u32 920167782, %v333
    %v346 = vor.u32 %v344, %v345
    %v347 = vshll.u32 920167782, %v332
    %v348 = vshrl.u32 1326507024, %v333
    %v349 = vor.u32 %v347, %v348
    %vm350 = vcmp.lt.s32.totalorder %v331, 1
    %vm351 = vcmp.lt.s32.totalorder %v331, 2
    %vm352 = vcmp.lt.s32.totalorder %v331, 3
    %vm353 = vcmp.lt.s32.totalorder %v331, 4
    %v354 = vsel %vm350, %v334, %v337
    %v355 = vsel %vm353, %v343, 2102212464
    %v356 = vsel %vm352, %v340, %v355
    %v357 = vsel %vm351, %v354, %v356
    %v358 = vsel %vm350, %v337, %v340
    %v359 = vsel %vm353, %v346, 920167782
    %v360 = vsel %vm352, %v343, %v359
    %v361 = vsel %vm351, %v358, %v360
    %v362 = vsel %vm350, %v340, %v343
    %v363 = vsel %vm353, %v349, 1326507024
    %v364 = vsel %vm352, %v346, %v363
    %v365 = vsel %vm351, %v362, %v364
    %v366 = vshll.u32 %v326, 8
    %v367 = vand.u32 %v366, 65535
    %v368 = vshrl.u32 %v366, 16
    %v369 = vand.u32 %v365, 65535
    %v370 = vshrl.u32 %v365, 16
    %v371 = vmul.u32 %v367, %v369
    %v372 = vmul.u32 %v367, %v370
    %v373 = vmul.u32 %v368, %v369
    %v374 = vmul.u32 %v368, %v370
    %v375 = vshll.u32 %v372, 16
    %v376 = vshrl.u32 %v372, 16
    %v377 = vshll.u32 %v373, 16
    %v378 = vshrl.u32 %v373, 16
    %vm379 = vc.u32 %v371, %v375
    %v380 = vsel %vm379, 1, 0
    %v381 = vadd.s32 %v371, %v375
    %v382 = vadd.s32 %v374, %v380
    %vm383 = vc.u32 %v381, %v377
    %v384 = vsel %vm383, 1, 0
    %v385 = vadd.s32 %v381, %v377
    %v386 = vadd.s32 %v382, %v384
    %v387 = vadd.s32 %v386, %v376
    %v388 = vadd.s32 %v387, %v378
    %v389 = vand.u32 %v366, 65535
    %v390 = vshrl.u32 %v366, 16
    %v391 = vand.u32 %v361, 65535
    %v392 = vshrl.u32 %v361, 16
    %v393 = vmul.u32 %v389, %v391
    %v394 = vmul.u32 %v389, %v392
    %v395 = vmul.u32 %v390, %v391
    %v396 = vmul.u32 %v390, %v392
    %v397 = vshll.u32 %v394, 16
    %v398 = vshrl.u32 %v394, 16
    %v399 = vshll.u32 %v395, 16
    %v400 = vshrl.u32 %v395, 16
    %vm401 = vc.u32 %v393, %v397
    %v402 = vsel %vm401, 1, 0
    %v403 = vadd.s32 %v393, %v397
    %v404 = vadd.s32 %v396, %v402
    %vm405 = vc.u32 %v403, %v399
    %v406 = vsel %vm405, 1, 0
    %v407 = vadd.s32 %v403, %v399
    %v408 = vadd.s32 %v404, %v406
    %v409 = vadd.s32 %v408, %v398
    %v410 = vadd.s32 %v409, %v400
    %v411 = vmul.u32 %v366, %v357
    %v412 = vadd.s32 %v388, %v407
    %vm413 = vc.u32 %v388, %v407
    %v414 = vadd.s32 %v410, 1
    %v415 = vsel %vm413, %v414, %v410
    %v416 = vadd.s32 %v411, %v415
    %v417 = vadd.s32 %v416, 536870912
    %v418 = vshrl.u32 %v417, 30
    %v419 = vshll.u32 %v418, 30
    %v420 = vsub.s32 %v416, %v419
    %vm421 = vcmp.lt.s32.totalorder %v420, 0
    %v422 = vsub.s32 0, %v420
    %v423 = vsel %vm421, %v422, %v420
    %v424 = vclz %v423
    %v425 = vsub.s32 %v424, 2
    %vm426 = vcmp.gt.s32.totalorder 0, %v425
    %v427 = vsel %vm426, 0, %v425
    %v428 = vsub.s32 32, %v427
    %v429 = vshll.u32 %v420, %v427
    %v430 = vshrl.u32 %v412, %v428
    %v431 = vor.u32 %v429, %v430
    %v432 = vsub.s32 4294967266, %v427
    %v433 = vadd.s32 %v432, 127
    %v434 = vshll.u32 %v433, 23
    %v435 = vor.u32 4788187, %v434
    %v436 = vand.u32 2147483647, %v435
    %v438 = vcvt.s32.f32 %v431
    %v439 = vmul.f32 %v438, %v436
    %v440 = vxor.u32 %v439, 2147483648
    %v441 = vsel %vm320, %v440, %v439
    %v442 = vsub.s32 4, %v418
    %v443 = vsel %vm320, %v442, %v418
    %v444 = vsel %vm319, %v148, %v441
    %v445 = vsel %vm319, 0, %v443
    %v446 = vmul.f32 %v444, %v444
    %v447 = vmul.f32 %v446, -0.001358992
    %v448 = vadd.f32 %v447, 0.041655596
    %v449 = vmul.f32 %v446, %v448
    %v450 = vadd.f32 %v449, -0.4999988
    %v451 = vmul.f32 %v446, %v450
    %v452 = vadd.f32 1.0, %v451
    %v453 = vmul.f32 %v444, %v444
    %v454 = vmul.f32 %v453, -0.00019511016
    %v455 = vadd.f32 %v454, 0.008332121
    %v456 = vmul.f32 %v453, %v455
    %v457 = vadd.f32 %v456, -0.16666654
    %v458 = vmul.f32 %v453, %v457
    %v459 = vadd.f32 %v458, 1.0
    %v460 = vmul.f32 %v459, %v444
    %vm461 = vweird.f32 %v148
    %v462 = vadd.s32 %v445, 3
    %v463 = vand.u32 %v462, 3
    %vm464 = vcmp.lt.s32.totalorder %v463, 2
    %vm465 = vcmp.eq.s32.totalorder %v463, 0
    %v466 = vxor.u32 %v460, 2147483648
    %v467 = vsel %vm465, %v452, %v466
    %vm468 = vcmp.eq.s32.totalorder %v463, 2
    %v469 = vxor.u32 %v452, 2147483648
    %v470 = vsel %vm468, %v469, %v460
    %v471 = vsel %vm464, %v467, %v470
    %v472 = vsel %vm461, nan, %v471
    %v473 = vand.u32 2147483647, %v149
    %vm474 = vcmp.le.f32.partialorder %v473, 0.7853982
    %vm475 = vcmp.lt.s32.totalorder %v149, 0
    %v476 = vand.u32 %v149, 2139095040
    %v477 = vshrl.u32 %v476, 23
    %v478 = vsub.s32 %v477, 127
    %v479 = vand.u32 2147483647, %v149
    %v480 = vand.u32 %v479, 8388607
    %v481 = vor.u32 %v480, 8388608
    %v482 = vsub.s32 0, %v481
    %v483 = vadd.s32 %v478, 1
    %vm484 = vcmp.gt.s32.totalorder %v483, 0
    %v485 = vsel %vm484, %v483, 0
    %v486 = vshrl.u32 %v485, 5
    %v487 = vand.u32 %v485, 31
    %v488 = vsub.s32 32, %v487
    %v489 = vshrl.u32 683565275, %v488
    %v490 = vshll.u32 683565275, %v487
    %v491 = vshrl.u32 2475754826, %v488
    %v492 = vor.u32 %v490, %v491
    %v493 = vshll.u32 2475754826, %v487
    %v494 = vshrl.u32 2131351028, %v488
    %v495 = vor.u32 %v493, %v494
    %v496 = vshll.u32 2131351028, %v487
    %v497 = vshrl.u32 2102212464, %v488
    %v498 = vor.u32 %v496, %v497
    %v499 = vshll.u32 2102212464, %v487
    %v500 = vshrl.u32 920167782, %v488
    %v501 = vor.u32 %v499, %v500
    %v502 = vshll.u32 920167782, %v487
    %v503 = vshrl.u32 1326507024, %v488
    %v504 = vor.u32 %v502, %v503
    %vm505 = vcmp.lt.s32.totalorder %v486, 1
    %vm506 = vcmp.lt.s32.totalorder %v486, 2
    %vm507 = vcmp.lt.s32.totalorder %v486, 3
    %vm508 = vcmp.lt.s32.totalorder %v486, 4
    %v509 = vsel %vm505, %v489, %v492
    %v510 = vsel %vm508, %v498, 2102212464
    %v511 = vsel %vm507, %v495, %v510
    %v512 = vsel %vm506, %v509, %v511
    %v513 = vsel %vm505, %v492, %v495
    %v514 = vsel %vm508, %v501, 920167782
    %v515 = vsel %vm507, %v498, %v514
    %v516 = vsel %vm506, %v513, %v515
    %v517 = vsel %vm505, %v495, %v498
    %v518 = vsel %vm508, %v504, 1326507024
    %v519 = vsel %vm507, %v501, %v518
    %v520 = vsel %vm506, %v517, %v519
    %v521 = vshll.u32 %v481, 8
    %v522 = vand.u32 %v521, 65535
    %v523 = vshrl.u32 %v521, 16
    %v524 = vand.u32 %v520, 65535
    %v525 = vshrl.u32 %v520, 16
    %v526 = vmul.u32 %v522, %v524
    %v527 = vmul.u32 %v522, %v525
    %v528 = vmul.u32 %v523, %v524
    %v529 = vmul.u32 %v523, %v525
    %v530 = vshll.u32 %v527, 16
    %v531 = vshrl.u32 %v527, 16
    %v532 = vshll.u32 %v528, 16
    %v533 = vshrl.u32 %v528, 16
    %vm534 = vc.u32 %v526, %v530
    %v535 = vsel %vm534, 1, 0
    %v536 = vadd.s32 %v526, %v530
    %v537 = vadd.s32 %v529, %v535
    %vm538 = vc.u32 %v536, %v532
    %v539 = vsel %vm538, 1, 0
    %v540 = vadd.s32 %v536, %v532
    %v541 = vadd.s32 %v537, %v539
    %v542 = vadd.s32 %v541, %v531
    %v543 = vadd.s32 %v542, %v533
    %v544 = vand.u32 %v521, 65535
    %v545 = vshrl.u32 %v521, 16
    %v546 = vand.u32 %v516, 65535
    %v547 = vshrl.u32 %v516, 16
    %v548 = vmul.u32 %v544, %v546
    %v549 = vmul.u32 %v544, %v547
    %v550 = vmul.u32 %v545, %v546
    %v551 = vmul.u32 %v545, %v547
    %v552 = vshll.u32 %v549, 16
    %v553 = vshrl.u32 %v549, 16
    %v554 = vshll.u32 %v550, 16
    %v555 = vshrl.u32 %v550, 16
    %vm556 = vc.u32 %v548, %v552
    %v557 = vsel %vm556, 1, 0
    %v558 = vadd.s32 %v548, %v552
    %v559 = vadd.s32 %v551, %v557
    %vm560 = vc.u32 %v558, %v554
    %v561 = vsel %vm560, 1, 0
    %v562 = vadd.s32 %v558, %v554
    %v563 = vadd.s32 %v559, %v561
    %v564 = vadd.s32 %v563, %v553
    %v565 = vadd.s32 %v564, %v555
    %v566 = vmul.u32 %v521, %v512
    %v567 = vadd.s32 %v543, %v562
    %vm568 = vc.u32 %v543, %v562
    %v569 = vadd.s32 %v565, 1
    %v570 = vsel %vm568, %v569, %v565
    %v571 = vadd.s32 %v566, %v570
    %v572 = vadd.s32 %v571, 536870912
    %v573 = vshrl.u32 %v572, 30
    %v574 = vshll.u32 %v573, 30
    %v575 = vsub.s32 %v571, %v574
    %vm576 = vcmp.lt.s32.totalorder %v575, 0
    %v577 = vsub.s32 0, %v575
    %v578 = vsel %vm576, %v577, %v575
    %v579 = vclz %v578
    %v580 = vsub.s32 %v579, 2
    %vm581 = vcmp.gt.s32.totalorder 0, %v580
    %v582 = vsel %vm581, 0, %v580
    %v583 = vsub.s32 32, %v582
    %v584 = vshll.u32 %v575, %v582
    %v585 = vshrl.u32 %v567, %v583
    %v586 = vor.u32 %v584, %v585
    %v587 = vsub.s32 4294967266, %v582
    %v588 = vadd.s32 %v587, 127
    %v589 = vshll.u32 %v588, 23
    %v590 = vor.u32 4788187, %v589
    %v591 = vand.u32 2147483647, %v590
    %v593 = vcvt.s32.f32 %v586
    %v594 = vmul.f32 %v593, %v591
    %v595 = vxor.u32 %v594, 2147483648
    %v596 = vsel %vm475, %v595, %v594
    %v597 = vsub.s32 4, %v573
    %v598 = vsel %vm475, %v597, %v573
    %v599 = vsel %vm474, %v149, %v596
    %v600 = vsel %vm474, 0, %v598
    %v601 = vmul.f32 %v599, %v599
    %v602 = vmul.f32 %v601, -0.001358992
    %v603 = vadd.f32 %v602, 0.041655596
    %v604 = vmul.f32 %v601, %v603
    %v605 = vadd.f32 %v604, -0.4999988
    %v606 = vmul.f32 %v601, %v605
    %v607 = vadd.f32 1.0, %v606
    %v608 = vmul.f32 %v599, %v599
    %v609 = vmul.f32 %v608, -0.00019511016
    %v610 = vadd.f32 %v609, 0.008332121
    %v611 = vmul.f32 %v608, %v610
    %v612 = vadd.f32 %v611, -0.16666654
    %v613 = vmul.f32 %v608, %v612
    %v614 = vadd.f32 %v613, 1.0
    %v615 = vmul.f32 %v614, %v599
    %vm616 = vweird.f32 %v149
    %v617 = vadd.s32 %v600, 3
    %v618 = vand.u32 %v617, 3
    %vm619 = vcmp.lt.s32.totalorder %v618, 2
    %vm620 = vcmp.eq.s32.totalorder %v618, 0
    %v621 = vxor.u32 %v615, 2147483648
    %v622 = vsel %vm620, %v607, %v621
    %vm623 = vcmp.eq.s32.totalorder %v618, 2
    %v624 = vxor.u32 %v607, 2147483648
    %v625 = vsel %vm623, %v624, %v615
    %v626 = vsel %vm619, %v622, %v625
    %v627 = vsel %vm616, nan, %v626
    %v628 = vand.u32 2147483647, %v150
    %vm629 = vcmp.le.f32.partialorder %v628, 0.7853982
    %vm630 = vcmp.lt.s32.totalorder %v150, 0
    %v631 = vand.u32 %v150, 2139095040
    %v632 = vshrl.u32 %v631, 23
    %v633 = vsub.s32 %v632, 127
    %v634 = vand.u32 2147483647, %v150
    %v635 = vand.u32 %v634, 8388607
    %v636 = vor.u32 %v635, 8388608
    %v637 = vsub.s32 0, %v636
    %v638 = vadd.s32 %v633, 1
    %vm639 = vcmp.gt.s32.totalorder %v638, 0
    %v640 = vsel %vm639, %v638, 0
    %v641 = vshrl.u32 %v640, 5
    %v642 = vand.u32 %v640, 31
    %v643 = vsub.s32 32, %v642
    %v644 = vshrl.u32 683565275, %v643
    %v645 = vshll.u32 683565275, %v642
    %v646 = vshrl.u32 2475754826, %v643
    %v647 = vor.u32 %v645, %v646
    %v648 = vshll.u32 2475754826, %v642
    %v649 = vshrl.u32 2131351028, %v643
    %v650 = vor.u32 %v648, %v649
    %v651 = vshll.u32 2131351028, %v642
    %v652 = vshrl.u32 2102212464, %v643
    %v653 = vor.u32 %v651, %v652
    %v654 = vshll.u32 2102212464, %v642
    %v655 = vshrl.u32 920167782, %v643
    %v656 = vor.u32 %v654, %v655
    %v657 = vshll.u32 920167782, %v642
    %v658 = vshrl.u32 1326507024, %v643
    %v659 = vor.u32 %v657, %v658
    %vm660 = vcmp.lt.s32.totalorder %v641, 1
    %vm661 = vcmp.lt.s32.totalorder %v641, 2
    %vm662 = vcmp.lt.s32.totalorder %v641, 3
    %vm663 = vcmp.lt.s32.totalorder %v641, 4
    %v664 = vsel %vm660, %v644, %v647
    %v665 = vsel %vm663, %v653, 2102212464
    %v666 = vsel %vm662, %v650, %v665
    %v667 = vsel %vm661, %v664, %v666
    %v668 = vsel %vm660, %v647, %v650
    %v669 = vsel %vm663, %v656, 920167782
    %v670 = vsel %vm662, %v653, %v669
    %v671 = vsel %vm661, %v668, %v670
    %v672 = vsel %vm660, %v650, %v653
    %v673 = vsel %vm663, %v659, 1326507024
    %v674 = vsel %vm662, %v656, %v673
    %v675 = vsel %vm661, %v672, %v674
    %v676 = vshll.u32 %v636, 8
    %v677 = vand.u32 %v676, 65535
    %v678 = vshrl.u32 %v676, 16
    %v679 = vand.u32 %v675, 65535
    %v680 = vshrl.u32 %v675, 16
    %v681 = vmul.u32 %v677, %v679
    %v682 = vmul.u32 %v677, %v680
    %v683 = vmul.u32 %v678, %v679
    %v684 = vmul.u32 %v678, %v680
    %v685 = vshll.u32 %v682, 16
    %v686 = vshrl.u32 %v682, 16
    %v687 = vshll.u32 %v683, 16
    %v688 = vshrl.u32 %v683, 16
    %vm689 = vc.u32 %v681, %v685
    %v690 = vsel %vm689, 1, 0
    %v691 = vadd.s32 %v681, %v685
    %v692 = vadd.s32 %v684, %v690
    %vm693 = vc.u32 %v691, %v687
    %v694 = vsel %vm693, 1, 0
    %v695 = vadd.s32 %v691, %v687
    %v696 = vadd.s32 %v692, %v694
    %v697 = vadd.s32 %v696, %v686
    %v698 = vadd.s32 %v697, %v688
    %v699 = vand.u32 %v676, 65535
    %v700 = vshrl.u32 %v676, 16
    %v701 = vand.u32 %v671, 65535
    %v702 = vshrl.u32 %v671, 16
    %v703 = vmul.u32 %v699, %v701
    %v704 = vmul.u32 %v699, %v702
    %v705 = vmul.u32 %v700, %v701
    %v706 = vmul.u32 %v700, %v702
    %v707 = vshll.u32 %v704, 16
    %v708 = vshrl.u32 %v704, 16
    %v709 = vshll.u32 %v705, 16
    %v710 = vshrl.u32 %v705, 16
    %vm711 = vc.u32 %v703, %v707
    %v712 = vsel %vm711, 1, 0
    %v713 = vadd.s32 %v703, %v707
    %v714 = vadd.s32 %v706, %v712
    %vm715 = vc.u32 %v713, %v709
    %v716 = vsel %vm715, 1, 0
    %v717 = vadd.s32 %v713, %v709
    %v718 = vadd.s32 %v714, %v716
    %v719 = vadd.s32 %v718, %v708
    %v720 = vadd.s32 %v719, %v710
    %v721 = vmul.u32 %v676, %v667
    %v722 = vadd.s32 %v698, %v717
    %vm723 = vc.u32 %v698, %v717
    %v724 = vadd.s32 %v720, 1
    %v725 = vsel %vm723, %v724, %v720
    %v726 = vadd.s32 %v721, %v725
    %v727 = vadd.s32 %v726, 536870912
    %v728 = vshrl.u32 %v727, 30
    %v729 = vshll.u32 %v728, 30
    %v730 = vsub.s32 %v726, %v729
    %vm731 = vcmp.lt.s32.totalorder %v730, 0
    %v732 = vsub.s32 0, %v730
    %v733 = vsel %vm731, %v732, %v730
    %v734 = vclz %v733
    %v735 = vsub.s32 %v734, 2
    %vm736 = vcmp.gt.s32.totalorder 0, %v735
    %v737 = vsel %vm736, 0, %v735
    %v738 = vsub.s32 32, %v737
    %v739 = vshll.u32 %v730, %v737
    %v740 = vshrl.u32 %v722, %v738
    %v741 = vor.u32 %v739, %v740
    %v742 = vsub.s32 4294967266, %v737
    %v743 = vadd.s32 %v742, 127
    %v744 = vshll.u32 %v743, 23
    %v745 = vor.u32 4788187, %v744
    %v746 = vand.u32 2147483647, %v745
    %v748 = vcvt.s32.f32 %v741
    %v749 = vmul.f32 %v748, %v746
    %v750 = vxor.u32 %v749, 2147483648
    %v751 = vsel %vm630, %v750, %v749
    %v752 = vsub.s32 4, %v728
    %v753 = vsel %vm630, %v752, %v728
    %v754 = vsel %vm629, %v150, %v751
    %v755 = vsel %vm629, 0, %v753
    %v756 = vmul.f32 %v754, %v754
    %v757 = vmul.f32 %v756, -0.001358992
    %v758 = vadd.f32 %v757, 0.041655596
    %v759 = vmul.f32 %v756, %v758
    %v760 = vadd.f32 %v759, -0.4999988
    %v761 = vmul.f32 %v756, %v760
    %v762 = vadd.f32 1.0, %v761
    %v763 = vmul.f32 %v754, %v754
    %v764 = vmul.f32 %v763, -0.00019511016
    %v765 = vadd.f32 %v764, 0.008332121
    %v766 = vmul.f32 %v763, %v765
    %v767 = vadd.f32 %v766, -0.16666654
    %v768 = vmul.f32 %v763, %v767
    %v769 = vadd.f32 %v768, 1.0
    %v770 = vmul.f32 %v769, %v754
    %vm771 = vweird.f32 %v150
    %v772 = vadd.s32 %v755, 3
    %v773 = vand.u32 %v772, 3
    %vm774 = vcmp.lt.s32.totalorder %v773, 2
    %vm775 = vcmp.eq.s32.totalorder %v773, 0
    %v776 = vxor.u32 %v770, 2147483648
    %v777 = vsel %vm775, %v762, %v776
    %vm778 = vcmp.eq.s32.totalorder %v773, 2
    %v779 = vxor.u32 %v762, 2147483648
    %v780 = vsel %vm778, %v779, %v770
    %v781 = vsel %vm774, %v777, %v780
    %v782 = vsel %vm771, nan, %v781
    %v783 = vand.u32 2147483647, %v151
    %vm784 = vcmp.le.f32.partialorder %v783, 0.7853982
    %vm785 = vcmp.lt.s32.totalorder %v151, 0
    %v786 = vand.u32 %v151, 2139095040
    %v787 = vshrl.u32 %v786, 23
    %v788 = vsub.s32 %v787, 127
    %v789 = vand.u32 2147483647, %v151
    %v790 = vand.u32 %v789, 8388607
    %v791 = vor.u32 %v790, 8388608
    %v792 = vsub.s32 0, %v791
    %v793 = vadd.s32 %v788, 1
    %vm794 = vcmp.gt.s32.totalorder %v793, 0
    %v795 = vsel %vm794, %v793, 0
    %v796 = vshrl.u32 %v795, 5
    %v797 = vand.u32 %v795, 31
    %v798 = vsub.s32 32, %v797
    %v799 = vshrl.u32 683565275, %v798
    %v800 = vshll.u32 683565275, %v797
    %v801 = vshrl.u32 2475754826, %v798
    %v802 = vor.u32 %v800, %v801
    %v803 = vshll.u32 2475754826, %v797
    %v804 = vshrl.u32 2131351028, %v798
    %v805 = vor.u32 %v803, %v804
    %v806 = vshll.u32 2131351028, %v797
    %v807 = vshrl.u32 2102212464, %v798
    %v808 = vor.u32 %v806, %v807
    %v809 = vshll.u32 2102212464, %v797
    %v810 = vshrl.u32 920167782, %v798
    %v811 = vor.u32 %v809, %v810
    %v812 = vshll.u32 920167782, %v797
    %v813 = vshrl.u32 1326507024, %v798
    %v814 = vor.u32 %v812, %v813
    %vm815 = vcmp.lt.s32.totalorder %v796, 1
    %vm816 = vcmp.lt.s32.totalorder %v796, 2
    %vm817 = vcmp.lt.s32.totalorder %v796, 3
    %vm818 = vcmp.lt.s32.totalorder %v796, 4
    %v819 = vsel %vm815, %v799, %v802
    %v820 = vsel %vm818, %v808, 2102212464
    %v821 = vsel %vm817, %v805, %v820
    %v822 = vsel %vm816, %v819, %v821
    %v823 = vsel %vm815, %v802, %v805
    %v824 = vsel %vm818, %v811, 920167782
    %v825 = vsel %vm817, %v808, %v824
    %v826 = vsel %vm816, %v823, %v825
    %v827 = vsel %vm815, %v805, %v808
    %v828 = vsel %vm818, %v814, 1326507024
    %v829 = vsel %vm817, %v811, %v828
    %v830 = vsel %vm816, %v827, %v829
    %v831 = vshll.u32 %v791, 8
    %v832 = vand.u32 %v831, 65535
    %v833 = vshrl.u32 %v831, 16
    %v834 = vand.u32 %v830, 65535
    %v835 = vshrl.u32 %v830, 16
    %v836 = vmul.u32 %v832, %v834
    %v837 = vmul.u32 %v832, %v835
    %v838 = vmul.u32 %v833, %v834
    %v839 = vmul.u32 %v833, %v835
    %v840 = vshll.u32 %v837, 16
    %v841 = vshrl.u32 %v837, 16
    %v842 = vshll.u32 %v838, 16
    %v843 = vshrl.u32 %v838, 16
    %vm844 = vc.u32 %v836, %v840
    %v845 = vsel %vm844, 1, 0
    %v846 = vadd.s32 %v836, %v840
    %v847 = vadd.s32 %v839, %v845
    %vm848 = vc.u32 %v846, %v842
    %v849 = vsel %vm848, 1, 0
    %v850 = vadd.s32 %v846, %v842
    %v851 = vadd.s32 %v847, %v849
    %v852 = vadd.s32 %v851, %v841
    %v853 = vadd.s32 %v852, %v843
    %v854 = vand.u32 %v831, 65535
    %v855 = vshrl.u32 %v831, 16
    %v856 = vand.u32 %v826, 65535
    %v857 = vshrl.u32 %v826, 16
    %v858 = vmul.u32 %v854, %v856
    %v859 = vmul.u32 %v854, %v857
    %v860 = vmul.u32 %v855, %v856
    %v861 = vmul.u32 %v855, %v857
    %v862 = vshll.u32 %v859, 16
    %v863 = vshrl.u32 %v859, 16
    %v864 = vshll.u32 %v860, 16
    %v865 = vshrl.u32 %v860, 16
    %vm866 = vc.u32 %v858, %v862
    %v867 = vsel %vm866, 1, 0
    %v868 = vadd.s32 %v858, %v862
    %v869 = vadd.s32 %v861, %v867
    %vm870 = vc.u32 %v868, %v864
    %v871 = vsel %vm870, 1, 0
    %v872 = vadd.s32 %v868, %v864
    %v873 = vadd.s32 %v869, %v871
    %v874 = vadd.s32 %v873, %v863
    %v875 = vadd.s32 %v874, %v865
    %v876 = vmul.u32 %v831, %v822
    %v877 = vadd.s32 %v853, %v872
    %vm878 = vc.u32 %v853, %v872
    %v879 = vadd.s32 %v875, 1
    %v880 = vsel %vm878, %v879, %v875
    %v881 = vadd.s32 %v876, %v880
    %v882 = vadd.s32 %v881, 536870912
    %v883 = vshrl.u32 %v882, 30
    %v884 = vshll.u32 %v883, 30
    %v885 = vsub.s32 %v881, %v884
    %vm886 = vcmp.lt.s32.totalorder %v885, 0
    %v887 = vsub.s32 0, %v885
    %v888 = vsel %vm886, %v887, %v885
    %v889 = vclz %v888
    %v890 = vsub.s32 %v889, 2
    %vm891 = vcmp.gt.s32.totalorder 0, %v890
    %v892 = vsel %vm891, 0, %v890
    %v893 = vsub.s32 32, %v892
    %v894 = vshll.u32 %v885, %v892
    %v895 = vshrl.u32 %v877, %v893
    %v896 = vor.u32 %v894, %v895
    %v897 = vsub.s32 4294967266, %v892
    %v898 = vadd.s32 %v897, 127
    %v899 = vshll.u32 %v898, 23
    %v900 = vor.u32 4788187, %v899
    %v901 = vand.u32 2147483647, %v900
    %v903 = vcvt.s32.f32 %v896
    %v904 = vmul.f32 %v903, %v901
    %v905 = vxor.u32 %v904, 2147483648
    %v906 = vsel %vm785, %v905, %v904
    %v907 = vsub.s32 4, %v883
    %v908 = vsel %vm785, %v907, %v883
    %v909 = vsel %vm784, %v151, %v906
    %v910 = vsel %vm784, 0, %v908
    %v911 = vmul.f32 %v909, %v909
    %v912 = vmul.f32 %v911, -0.001358992
    %v913 = vadd.f32 %v912, 0.041655596
    %v914 = vmul.f32 %v911, %v913
    %v915 = vadd.f32 %v914, -0.4999988
    %v916 = vmul.f32 %v911, %v915
    %v917 = vadd.f32 1.0, %v916
    %v918 = vmul.f32 %v909, %v909
    %v919 = vmul.f32 %v918, -0.00019511016
    %v920 = vadd.f32 %v919, 0.008332121
    %v921 = vmul.f32 %v918, %v920
    %v922 = vadd.f32 %v921, -0.16666654
    %v923 = vmul.f32 %v918, %v922
    %v924 = vadd.f32 %v923, 1.0
    %v925 = vmul.f32 %v924, %v909
    %vm926 = vweird.f32 %v151
    %v927 = vadd.s32 %v910, 3
    %v928 = vand.u32 %v927, 3
    %vm929 = vcmp.lt.s32.totalorder %v928, 2
    %vm930 = vcmp.eq.s32.totalorder %v928, 0
    %v931 = vxor.u32 %v925, 2147483648
    %v932 = vsel %vm930, %v917, %v931
    %vm933 = vcmp.eq.s32.totalorder %v928, 2
    %v934 = vxor.u32 %v917, 2147483648
    %v935 = vsel %vm933, %v934, %v925
    %v936 = vsel %vm929, %v932, %v935
    %v937 = vsel %vm926, nan, %v936
    %v938 = vand.u32 2147483647, %v152
    %vm939 = vcmp.le.f32.partialorder %v938, 0.7853982
    %vm940 = vcmp.lt.s32.totalorder %v152, 0
    %v941 = vand.u32 %v152, 2139095040
    %v942 = vshrl.u32 %v941, 23
    %v943 = vsub.s32 %v942, 127
    %v944 = vand.u32 2147483647, %v152
    %v945 = vand.u32 %v944, 8388607
    %v946 = vor.u32 %v945, 8388608
    %v947 = vsub.s32 0, %v946
    %v948 = vadd.s32 %v943, 1
    %vm949 = vcmp.gt.s32.totalorder %v948, 0
    %v950 = vsel %vm949, %v948, 0
    %v951 = vshrl.u32 %v950, 5
    %v952 = vand.u32 %v950, 31
    %v953 = vsub.s32 32, %v952
    %v954 = vshrl.u32 683565275, %v953
    %v955 = vshll.u32 683565275, %v952
    %v956 = vshrl.u32 2475754826, %v953
    %v957 = vor.u32 %v955, %v956
    %v958 = vshll.u32 2475754826, %v952
    %v959 = vshrl.u32 2131351028, %v953
    %v960 = vor.u32 %v958, %v959
    %v961 = vshll.u32 2131351028, %v952
    %v962 = vshrl.u32 2102212464, %v953
    %v963 = vor.u32 %v961, %v962
    %v964 = vshll.u32 2102212464, %v952
    %v965 = vshrl.u32 920167782, %v953
    %v966 = vor.u32 %v964, %v965
    %v967 = vshll.u32 920167782, %v952
    %v968 = vshrl.u32 1326507024, %v953
    %v969 = vor.u32 %v967, %v968
    %vm970 = vcmp.lt.s32.totalorder %v951, 1
    %vm971 = vcmp.lt.s32.totalorder %v951, 2
    %vm972 = vcmp.lt.s32.totalorder %v951, 3
    %vm973 = vcmp.lt.s32.totalorder %v951, 4
    %v974 = vsel %vm970, %v954, %v957
    %v975 = vsel %vm973, %v963, 2102212464
    %v976 = vsel %vm972, %v960, %v975
    %v977 = vsel %vm971, %v974, %v976
    %v978 = vsel %vm970, %v957, %v960
    %v979 = vsel %vm973, %v966, 920167782
    %v980 = vsel %vm972, %v963, %v979
    %v981 = vsel %vm971, %v978, %v980
    %v982 = vsel %vm970, %v960, %v963
    %v983 = vsel %vm973, %v969, 1326507024
    %v984 = vsel %vm972, %v966, %v983
    %v985 = vsel %vm971, %v982, %v984
    %v986 = vshll.u32 %v946, 8
    %v987 = vand.u32 %v986, 65535
    %v988 = vshrl.u32 %v986, 16
    %v989 = vand.u32 %v985, 65535
    %v990 = vshrl.u32 %v985, 16
    %v991 = vmul.u32 %v987, %v989
    %v992 = vmul.u32 %v987, %v990
    %v993 = vmul.u32 %v988, %v989
    %v994 = vmul.u32 %v988, %v990
    %v995 = vshll.u32 %v992, 16
    %v996 = vshrl.u32 %v992, 16
    %v997 = vshll.u32 %v993, 16
    %v998 = vshrl.u32 %v993, 16
    %vm999 = vc.u32 %v991, %v995
    %v1000 = vsel %vm999, 1, 0
    %v1001 = vadd.s32 %v991, %v995
    %v1002 = vadd.s32 %v994, %v1000
    %vm1003 = vc.u32 %v1001, %v997
    %v1004 = vsel %vm1003, 1, 0
    %v1005 = vadd.s32 %v1001, %v997
    %v1006 = vadd.s32 %v1002, %v1004
    %v1007 = vadd.s32 %v1006, %v996
    %v1008 = vadd.s32 %v1007, %v998
    %v1009 = vand.u32 %v986, 65535
    %v1010 = vshrl.u32 %v986, 16
    %v1011 = vand.u32 %v981, 65535
    %v1012 = vshrl.u32 %v981, 16
    %v1013 = vmul.u32 %v1009, %v1011
    %v1014 = vmul.u32 %v1009, %v1012
    %v1015 = vmul.u32 %v1010, %v1011
    %v1016 = vmul.u32 %v1010, %v1012
    %v1017 = vshll.u32 %v1014, 16
    %v1018 = vshrl.u32 %v1014, 16
    %v1019 = vshll.u32 %v1015, 16
    %v1020 = vshrl.u32 %v1015, 16
    %vm1021 = vc.u32 %v1013, %v1017
    %v1022 = vsel %vm1021, 1, 0
    %v1023 = vadd.s32 %v1013, %v1017
    %v1024 = vadd.s32 %v1016, %v1022
    %vm1025 = vc.u32 %v1023, %v1019
    %v1026 = vsel %vm1025, 1, 0
    %v1027 = vadd.s32 %v1023, %v1019
    %v1028 = vadd.s32 %v1024, %v1026
    %v1029 = vadd.s32 %v1028, %v1018
    %v1030 = vadd.s32 %v1029, %v1020
    %v1031 = vmul.u32 %v986, %v977
    %v1032 = vadd.s32 %v1008, %v1027
    %vm1033 = vc.u32 %v1008, %v1027
    %v1034 = vadd.s32 %v1030, 1
    %v1035 = vsel %vm1033, %v1034, %v1030
    %v1036 = vadd.s32 %v1031, %v1035
    %v1037 = vadd.s32 %v1036, 536870912
    %v1038 = vshrl.u32 %v1037, 30
    %v1039 = vshll.u32 %v1038, 30
    %v1040 = vsub.s32 %v1036, %v1039
    %vm1041 = vcmp.lt.s32.totalorder %v1040, 0
    %v1042 = vsub.s32 0, %v1040
    %v1043 = vsel %vm1041, %v1042, %v1040
    %v1044 = vclz %v1043
    %v1045 = vsub.s32 %v1044, 2
    %vm1046 = vcmp.gt.s32.totalorder 0, %v1045
    %v1047 = vsel %vm1046, 0, %v1045
    %v1048 = vsub.s32 32, %v1047
    %v1049 = vshll.u32 %v1040, %v1047
    %v1050 = vshrl.u32 %v1032, %v1048
    %v1051 = vor.u32 %v1049, %v1050
    %v1052 = vsub.s32 4294967266, %v1047
    %v1053 = vadd.s32 %v1052, 127
    %v1054 = vshll.u32 %v1053, 23
    %v1055 = vor.u32 4788187, %v1054
    %v1056 = vand.u32 2147483647, %v1055
    %v1058 = vcvt.s32.f32 %v1051
    %v1059 = vmul.f32 %v1058, %v1056
    %v1060 = vxor.u32 %v1059, 2147483648
    %v1061 = vsel %vm940, %v1060, %v1059
    %v1062 = vsub.s32 4, %v1038
    %v1063 = vsel %vm940, %v1062, %v1038
    %v1064 = vsel %vm939, %v152, %v1061
    %v1065 = vsel %vm939, 0, %v1063
    %v1066 = vmul.f32 %v1064, %v1064
    %v1067 = vmul.f32 %v1066, -0.001358992
    %v1068 = vadd.f32 %v1067, 0.041655596
    %v1069 = vmul.f32 %v1066, %v1068
    %v1070 = vadd.f32 %v1069, -0.4999988
    %v1071 = vmul.f32 %v1066, %v1070
    %v1072 = vadd.f32 1.0, %v1071
    %v1073 = vmul.f32 %v1064, %v1064
    %v1074 = vmul.f32 %v1073, -0.00019511016
    %v1075 = vadd.f32 %v1074, 0.008332121
    %v1076 = vmul.f32 %v1073, %v1075
    %v1077 = vadd.f32 %v1076, -0.16666654
    %v1078 = vmul.f32 %v1073, %v1077
    %v1079 = vadd.f32 %v1078, 1.0
    %v1080 = vmul.f32 %v1079, %v1064
    %vm1081 = vweird.f32 %v152
    %v1082 = vadd.s32 %v1065, 3
    %v1083 = vand.u32 %v1082, 3
    %vm1084 = vcmp.lt.s32.totalorder %v1083, 2
    %vm1085 = vcmp.eq.s32.totalorder %v1083, 0
    %v1086 = vxor.u32 %v1080, 2147483648
    %v1087 = vsel %vm1085, %v1072, %v1086
    %vm1088 = vcmp.eq.s32.totalorder %v1083, 2
    %v1089 = vxor.u32 %v1072, 2147483648
    %v1090 = vsel %vm1088, %v1089, %v1080
    %v1091 = vsel %vm1084, %v1087, %v1090
    %v1092 = vsel %vm1081, nan, %v1091
    %v1093 = vand.u32 2147483647, %v153
    %vm1094 = vcmp.le.f32.partialorder %v1093, 0.7853982
    %vm1095 = vcmp.lt.s32.totalorder %v153, 0
    %v1096 = vand.u32 %v153, 2139095040
    %v1097 = vshrl.u32 %v1096, 23
    %v1098 = vsub.s32 %v1097, 127
    %v1099 = vand.u32 2147483647, %v153
    %v1100 = vand.u32 %v1099, 8388607
    %v1101 = vor.u32 %v1100, 8388608
    %v1102 = vsub.s32 0, %v1101
    %v1103 = vadd.s32 %v1098, 1
    %vm1104 = vcmp.gt.s32.totalorder %v1103, 0
    %v1105 = vsel %vm1104, %v1103, 0
    %v1106 = vshrl.u32 %v1105, 5
    %v1107 = vand.u32 %v1105, 31
    %v1108 = vsub.s32 32, %v1107
    %v1109 = vshrl.u32 683565275, %v1108
    %v1110 = vshll.u32 683565275, %v1107
    %v1111 = vshrl.u32 2475754826, %v1108
    %v1112 = vor.u32 %v1110, %v1111
    %v1113 = vshll.u32 2475754826, %v1107
    %v1114 = vshrl.u32 2131351028, %v1108
    %v1115 = vor.u32 %v1113, %v1114
    %v1116 = vshll.u32 2131351028, %v1107
    %v1117 = vshrl.u32 2102212464, %v1108
    %v1118 = vor.u32 %v1116, %v1117
    %v1119 = vshll.u32 2102212464, %v1107
    %v1120 = vshrl.u32 920167782, %v1108
    %v1121 = vor.u32 %v1119, %v1120
    %v1122 = vshll.u32 920167782, %v1107
    %v1123 = vshrl.u32 1326507024, %v1108
    %v1124 = vor.u32 %v1122, %v1123
    %vm1125 = vcmp.lt.s32.totalorder %v1106, 1
    %vm1126 = vcmp.lt.s32.totalorder %v1106, 2
    %vm1127 = vcmp.lt.s32.totalorder %v1106, 3
    %vm1128 = vcmp.lt.s32.totalorder %v1106, 4
    %v1129 = vsel %vm1125, %v1109, %v1112
    %v1130 = vsel %vm1128, %v1118, 2102212464
    %v1131 = vsel %vm1127, %v1115, %v1130
    %v1132 = vsel %vm1126, %v1129, %v1131
    %v1133 = vsel %vm1125, %v1112, %v1115
    %v1134 = vsel %vm1128, %v1121, 920167782
    %v1135 = vsel %vm1127, %v1118, %v1134
    %v1136 = vsel %vm1126, %v1133, %v1135
    %v1137 = vsel %vm1125, %v1115, %v1118
    %v1138 = vsel %vm1128, %v1124, 1326507024
    %v1139 = vsel %vm1127, %v1121, %v1138
    %v1140 = vsel %vm1126, %v1137, %v1139
    %v1141 = vshll.u32 %v1101, 8
    %v1142 = vand.u32 %v1141, 65535
    %v1143 = vshrl.u32 %v1141, 16
    %v1144 = vand.u32 %v1140, 65535
    %v1145 = vshrl.u32 %v1140, 16
    %v1146 = vmul.u32 %v1142, %v1144
    %v1147 = vmul.u32 %v1142, %v1145
    %v1148 = vmul.u32 %v1143, %v1144
    %v1149 = vmul.u32 %v1143, %v1145
    %v1150 = vshll.u32 %v1147, 16
    %v1151 = vshrl.u32 %v1147, 16
    %v1152 = vshll.u32 %v1148, 16
    %v1153 = vshrl.u32 %v1148, 16
    %vm1154 = vc.u32 %v1146, %v1150
    %v1155 = vsel %vm1154, 1, 0
    %v1156 = vadd.s32 %v1146, %v1150
    %v1157 = vadd.s32 %v1149, %v1155
    %vm1158 = vc.u32 %v1156, %v1152
    %v1159 = vsel %vm1158, 1, 0
    %v1160 = vadd.s32 %v1156, %v1152
    %v1161 = vadd.s32 %v1157, %v1159
    %v1162 = vadd.s32 %v1161, %v1151
    %v1163 = vadd.s32 %v1162, %v1153
    %v1164 = vand.u32 %v1141, 65535
    %v1165 = vshrl.u32 %v1141, 16
    %v1166 = vand.u32 %v1136, 65535
    %v1167 = vshrl.u32 %v1136, 16
    %v1168 = vmul.u32 %v1164, %v1166
    %v1169 = vmul.u32 %v1164, %v1167
    %v1170 = vmul.u32 %v1165, %v1166
    %v1171 = vmul.u32 %v1165, %v1167
    %v1172 = vshll.u32 %v1169, 16
    %v1173 = vshrl.u32 %v1169, 16
    %v1174 = vshll.u32 %v1170, 16
    %v1175 = vshrl.u32 %v1170, 16
    %vm1176 = vc.u32 %v1168, %v1172
    %v1177 = vsel %vm1176, 1, 0
    %v1178 = vadd.s32 %v1168, %v1172
    %v1179 = vadd.s32 %v1171, %v1177
    %vm1180 = vc.u32 %v1178, %v1174
    %v1181 = vsel %vm1180, 1, 0
    %v1182 = vadd.s32 %v1178, %v1174
    %v1183 = vadd.s32 %v1179, %v1181
    %v1184 = vadd.s32 %v1183, %v1173
    %v1185 = vadd.s32 %v1184, %v1175
    %v1186 = vmul.u32 %v1141, %v1132
    %v1187 = vadd.s32 %v1163, %v1182
    %vm1188 = vc.u32 %v1163, %v1182
    %v1189 = vadd.s32 %v1185, 1
    %v1190 = vsel %vm1188, %v1189, %v1185
    %v1191 = vadd.s32 %v1186, %v1190
    %v1192 = vadd.s32 %v1191, 536870912
    %v1193 = vshrl.u32 %v1192, 30
    %v1194 = vshll.u32 %v1193, 30
    %v1195 = vsub.s32 %v1191, %v1194
    %vm1196 = vcmp.lt.s32.totalorder %v1195, 0
    %v1197 = vsub.s32 0, %v1195
    %v1198 = vsel %vm1196, %v1197, %v1195
    %v1199 = vclz %v1198
    %v1200 = vsub.s32 %v1199, 2
    %vm1201 = vcmp.gt.s32.totalorder 0, %v1200
    %v1202 = vsel %vm1201, 0, %v1200
    %v1203 = vsub.s32 32, %v1202
    %v1204 = vshll.u32 %v1195, %v1202
    %v1205 = vshrl.u32 %v1187, %v1203
    %v1206 = vor.u32 %v1204, %v1205
    %v1207 = vsub.s32 4294967266, %v1202
    %v1208 = vadd.s32 %v1207, 127
    %v1209 = vshll.u32 %v1208, 23
    %v1210 = vor.u32 4788187, %v1209
    %v1211 = vand.u32 2147483647, %v1210
    %v1213 = vcvt.s32.f32 %v1206
    %v1214 = vmul.f32 %v1213, %v1211
    %v1215 = vxor.u32 %v1214, 2147483648
    %v1216 = vsel %vm1095, %v1215, %v1214
    %v1217 = vsub.s32 4, %v1193
    %v1218 = vsel %vm1095, %v1217, %v1193
    %v1219 = vsel %vm1094, %v153, %v1216
    %v1220 = vsel %vm1094, 0, %v1218
    %v1221 = vmul.f32 %v1219, %v1219
    %v1222 = vmul.f32 %v1221, -0.001358992
    %v1223 = vadd.f32 %v1222, 0.041655596
    %v1224 = vmul.f32 %v1221, %v1223
    %v1225 = vadd.f32 %v1224, -0.4999988
    %v1226 = vmul.f32 %v1221, %v1225
    %v1227 = vadd.f32 1.0, %v1226
    %v1228 = vmul.f32 %v1219, %v1219
    %v1229 = vmul.f32 %v1228, -0.00019511016
    %v1230 = vadd.f32 %v1229, 0.008332121
    %v1231 = vmul.f32 %v1228, %v1230
    %v1232 = vadd.f32 %v1231, -0.16666654
    %v1233 = vmul.f32 %v1228, %v1232
    %v1234 = vadd.f32 %v1233, 1.0
    %v1235 = vmul.f32 %v1234, %v1219
    %vm1236 = vweird.f32 %v153
    %v1237 = vadd.s32 %v1220, 3
    %v1238 = vand.u32 %v1237, 3
    %vm1239 = vcmp.lt.s32.totalorder %v1238, 2
    %vm1240 = vcmp.eq.s32.totalorder %v1238, 0
    %v1241 = vxor.u32 %v1235, 2147483648
    %v1242 = vsel %vm1240, %v1227, %v1241
    %vm1243 = vcmp.eq.s32.totalorder %v1238, 2
    %v1244 = vxor.u32 %v1227, 2147483648
    %v1245 = vsel %vm1243, %v1244, %v1235
    %v1246 = vsel %vm1239, %v1242, %v1245
    %v1247 = vsel %vm1236, nan, %v1246
    %v1248 = vand.u32 2147483647, %v154
    %vm1249 = vcmp.le.f32.partialorder %v1248, 0.7853982
    %vm1250 = vcmp.lt.s32.totalorder %v154, 0
    %v1251 = vand.u32 %v154, 2139095040
    %v1252 = vshrl.u32 %v1251, 23
    %v1253 = vsub.s32 %v1252, 127
    %v1254 = vand.u32 2147483647, %v154
    %v1255 = vand.u32 %v1254, 8388607
    %v1256 = vor.u32 %v1255, 8388608
    %v1257 = vsub.s32 0, %v1256
    %v1258 = vadd.s32 %v1253, 1
    %vm1259 = vcmp.gt.s32.totalorder %v1258, 0
    %v1260 = vsel %vm1259, %v1258, 0
    %v1261 = vshrl.u32 %v1260, 5
    %v1262 = vand.u32 %v1260, 31
    %v1263 = vsub.s32 32, %v1262
    %v1264 = vshrl.u32 683565275, %v1263
    %v1265 = vshll.u32 683565275, %v1262
    %v1266 = vshrl.u32 2475754826, %v1263
    %v1267 = vor.u32 %v1265, %v1266
    %v1268 = vshll.u32 2475754826, %v1262
    %v1269 = vshrl.u32 2131351028, %v1263
    %v1270 = vor.u32 %v1268, %v1269
    %v1271 = vshll.u32 2131351028, %v1262
    %v1272 = vshrl.u32 2102212464, %v1263
    %v1273 = vor.u32 %v1271, %v1272
    %v1274 = vshll.u32 2102212464, %v1262
    %v1275 = vshrl.u32 920167782, %v1263
    %v1276 = vor.u32 %v1274, %v1275
    %v1277 = vshll.u32 920167782, %v1262
    %v1278 = vshrl.u32 1326507024, %v1263
    %v1279 = vor.u32 %v1277, %v1278
    %vm1280 = vcmp.lt.s32.totalorder %v1261, 1
    %vm1281 = vcmp.lt.s32.totalorder %v1261, 2
    %vm1282 = vcmp.lt.s32.totalorder %v1261, 3
    %vm1283 = vcmp.lt.s32.totalorder %v1261, 4
    %v1284 = vsel %vm1280, %v1264, %v1267
    %v1285 = vsel %vm1283, %v1273, 2102212464
    %v1286 = vsel %vm1282, %v1270, %v1285
    %v1287 = vsel %vm1281, %v1284, %v1286
    %v1288 = vsel %vm1280, %v1267, %v1270
    %v1289 = vsel %vm1283, %v1276, 920167782
    %v1290 = vsel %vm1282, %v1273, %v1289
    %v1291 = vsel %vm1281, %v1288, %v1290
    %v1292 = vsel %vm1280, %v1270, %v1273
    %v1293 = vsel %vm1283, %v1279, 1326507024
    %v1294 = vsel %vm1282, %v1276, %v1293
    %v1295 = vsel %vm1281, %v1292, %v1294
    %v1296 = vshll.u32 %v1256, 8
    %v1297 = vand.u32 %v1296, 65535
    %v1298 = vshrl.u32 %v1296, 16
    %v1299 = vand.u32 %v1295, 65535
    %v1300 = vshrl.u32 %v1295, 16
    %v1301 = vmul.u32 %v1297, %v1299
    %v1302 = vmul.u32 %v1297, %v1300
    %v1303 = vmul.u32 %v1298, %v1299
    %v1304 = vmul.u32 %v1298, %v1300
    %v1305 = vshll.u32 %v1302, 16
    %v1306 = vshrl.u32 %v1302, 16
    %v1307 = vshll.u32 %v1303, 16
    %v1308 = vshrl.u32 %v1303, 16
    %vm1309 = vc.u32 %v1301, %v1305
    %v1310 = vsel %vm1309, 1, 0
    %v1311 = vadd.s32 %v1301, %v1305
    %v1312 = vadd.s32 %v1304, %v1310
    %vm1313 = vc.u32 %v1311, %v1307
    %v1314 = vsel %vm1313, 1, 0
    %v1315 = vadd.s32 %v1311, %v1307
    %v1316 = vadd.s32 %v1312, %v1314
    %v1317 = vadd.s32 %v1316, %v1306
    %v1318 = vadd.s32 %v1317, %v1308
    %v1319 = vand.u32 %v1296, 65535
    %v1320 = vshrl.u32 %v1296, 16
    %v1321 = vand.u32 %v1291, 65535
    %v1322 = vshrl.u32 %v1291, 16
    %v1323 = vmul.u32 %v1319, %v1321
    %v1324 = vmul.u32 %v1319, %v1322
    %v1325 = vmul.u32 %v1320, %v1321
    %v1326 = vmul.u32 %v1320, %v1322
    %v1327 = vshll.u32 %v1324, 16
    %v1328 = vshrl.u32 %v1324, 16
    %v1329 = vshll.u32 %v1325, 16
    %v1330 = vshrl.u32 %v1325, 16
    %vm1331 = vc.u32 %v1323, %v1327
    %v1332 = vsel %vm1331, 1, 0
    %v1333 = vadd.s32 %v1323, %v1327
    %v1334 = vadd.s32 %v1326, %v1332
    %vm1335 = vc.u32 %v1333, %v1329
    %v1336 = vsel %vm1335, 1, 0
    %v1337 = vadd.s32 %v1333, %v1329
    %v1338 = vadd.s32 %v1334, %v1336
    %v1339 = vadd.s32 %v1338, %v1328
    %v1340 = vadd.s32 %v1339, %v1330
    %v1341 = vmul.u32 %v1296, %v1287
    %v1342 = vadd.s32 %v1318, %v1337
    %vm1343 = vc.u32 %v1318, %v1337
    %v1344 = vadd.s32 %v1340, 1
    %v1345 = vsel %vm1343, %v1344, %v1340
    %v1346 = vadd.s32 %v1341, %v1345
    %v1347 = vadd.s32 %v1346, 536870912
    %v1348 = vshrl.u32 %v1347, 30
    %v1349 = vshll.u32 %v1348, 30
    %v1350 = vsub.s32 %v1346, %v1349
    %vm1351 = vcmp.lt.s32.totalorder %v1350, 0
    %v1352 = vsub.s32 0, %v1350
    %v1353 = vsel %vm1351, %v1352, %v1350
    %v1354 = vclz %v1353
    %v1355 = vsub.s32 %v1354, 2
    %vm1356 = vcmp.gt.s32.totalorder 0, %v1355
    %v1357 = vsel %vm1356, 0, %v1355
    %v1358 = vsub.s32 32, %v1357
    %v1359 = vshll.u32 %v1350, %v1357
    %v1360 = vshrl.u32 %v1342, %v1358
    %v1361 = vor.u32 %v1359, %v1360
    %v1362 = vsub.s32 4294967266, %v1357
    %v1363 = vadd.s32 %v1362, 127
    %v1364 = vshll.u32 %v1363, 23
    %v1365 = vor.u32 4788187, %v1364
    %v1366 = vand.u32 2147483647, %v1365
    %v1368 = vcvt.s32.f32 %v1361
    %v1369 = vmul.f32 %v1368, %v1366
    %v1370 = vxor.u32 %v1369, 2147483648
    %v1371 = vsel %vm1250, %v1370, %v1369
    %v1372 = vsub.s32 4, %v1348
    %v1373 = vsel %vm1250, %v1372, %v1348
    %v1374 = vsel %vm1249, %v154, %v1371
    %v1375 = vsel %vm1249, 0, %v1373
    %v1376 = vmul.f32 %v1374, %v1374
    %v1377 = vmul.f32 %v1376, -0.001358992
    %v1378 = vadd.f32 %v1377, 0.041655596
    %v1379 = vmul.f32 %v1376, %v1378
    %v1380 = vadd.f32 %v1379, -0.4999988
    %v1381 = vmul.f32 %v1376, %v1380
    %v1382 = vadd.f32 1.0, %v1381
    %v1383 = vmul.f32 %v1374, %v1374
    %v1384 = vmul.f32 %v1383, -0.00019511016
    %v1385 = vadd.f32 %v1384, 0.008332121
    %v1386 = vmul.f32 %v1383, %v1385
    %v1387 = vadd.f32 %v1386, -0.16666654
    %v1388 = vmul.f32 %v1383, %v1387
    %v1389 = vadd.f32 %v1388, 1.0
    %v1390 = vmul.f32 %v1389, %v1374
    %vm1391 = vweird.f32 %v154
    %v1392 = vadd.s32 %v1375, 3
    %v1393 = vand.u32 %v1392, 3
    %vm1394 = vcmp.lt.s32.totalorder %v1393, 2
    %vm1395 = vcmp.eq.s32.totalorder %v1393, 0
    %v1396 = vxor.u32 %v1390, 2147483648
    %v1397 = vsel %vm1395, %v1382, %v1396
    %vm1398 = vcmp.eq.s32.totalorder %v1393, 2
    %v1399 = vxor.u32 %v1382, 2147483648
    %v1400 = vsel %vm1398, %v1399, %v1390
    %v1401 = vsel %vm1394, %v1397, %v1400
    %v1402 = vsel %vm1391, nan, %v1401
    %v1403 = vand.u32 2147483647, %v155
    %vm1404 = vcmp.le.f32.partialorder %v1403, 0.7853982
    %vm1405 = vcmp.lt.s32.totalorder %v155, 0
    %v1406 = vand.u32 %v155, 2139095040
    %v1407 = vshrl.u32 %v1406, 23
    %v1408 = vsub.s32 %v1407, 127
    %v1409 = vand.u32 2147483647, %v155
    %v1410 = vand.u32 %v1409, 8388607
    %v1411 = vor.u32 %v1410, 8388608
    %v1412 = vsub.s32 0, %v1411
    %v1413 = vadd.s32 %v1408, 1
    %vm1414 = vcmp.gt.s32.totalorder %v1413, 0
    %v1415 = vsel %vm1414, %v1413, 0
    %v1416 = vshrl.u32 %v1415, 5
    %v1417 = vand.u32 %v1415, 31
    %v1418 = vsub.s32 32, %v1417
    %v1419 = vshrl.u32 683565275, %v1418
    %v1420 = vshll.u32 683565275, %v1417
    %v1421 = vshrl.u32 2475754826, %v1418
    %v1422 = vor.u32 %v1420, %v1421
    %v1423 = vshll.u32 2475754826, %v1417
    %v1424 = vshrl.u32 2131351028, %v1418
    %v1425 = vor.u32 %v1423, %v1424
    %v1426 = vshll.u32 2131351028, %v1417
    %v1427 = vshrl.u32 2102212464, %v1418
    %v1428 = vor.u32 %v1426, %v1427
    %v1429 = vshll.u32 2102212464, %v1417
    %v1430 = vshrl.u32 920167782, %v1418
    %v1431 = vor.u32 %v1429, %v1430
    %v1432 = vshll.u32 920167782, %v1417
    %v1433 = vshrl.u32 1326507024, %v1418
    %v1434 = vor.u32 %v1432, %v1433
    %vm1435 = vcmp.lt.s32.totalorder %v1416, 1
    %vm1436 = vcmp.lt.s32.totalorder %v1416, 2
    %vm1437 = vcmp.lt.s32.totalorder %v1416, 3
    %vm1438 = vcmp.lt.s32.totalorder %v1416, 4
    %v1439 = vsel %vm1435, %v1419, %v1422
    %v1440 = vsel %vm1438, %v1428, 2102212464
    %v1441 = vsel %vm1437, %v1425, %v1440
    %v1442 = vsel %vm1436, %v1439, %v1441
    %v1443 = vsel %vm1435, %v1422, %v1425
    %v1444 = vsel %vm1438, %v1431, 920167782
    %v1445 = vsel %vm1437, %v1428, %v1444
    %v1446 = vsel %vm1436, %v1443, %v1445
    %v1447 = vsel %vm1435, %v1425, %v1428
    %v1448 = vsel %vm1438, %v1434, 1326507024
    %v1449 = vsel %vm1437, %v1431, %v1448
    %v1450 = vsel %vm1436, %v1447, %v1449
    %v1451 = vshll.u32 %v1411, 8
    %v1452 = vand.u32 %v1451, 65535
    %v1453 = vshrl.u32 %v1451, 16
    %v1454 = vand.u32 %v1450, 65535
    %v1455 = vshrl.u32 %v1450, 16
    %v1456 = vmul.u32 %v1452, %v1454
    %v1457 = vmul.u32 %v1452, %v1455
    %v1458 = vmul.u32 %v1453, %v1454
    %v1459 = vmul.u32 %v1453, %v1455
    %v1460 = vshll.u32 %v1457, 16
    %v1461 = vshrl.u32 %v1457, 16
    %v1462 = vshll.u32 %v1458, 16
    %v1463 = vshrl.u32 %v1458, 16
    %vm1464 = vc.u32 %v1456, %v1460
    %v1465 = vsel %vm1464, 1, 0
    %v1466 = vadd.s32 %v1456, %v1460
    %v1467 = vadd.s32 %v1459, %v1465
    %vm1468 = vc.u32 %v1466, %v1462
    %v1469 = vsel %vm1468, 1, 0
    %v1470 = vadd.s32 %v1466, %v1462
    %v1471 = vadd.s32 %v1467, %v1469
    %v1472 = vadd.s32 %v1471, %v1461
    %v1473 = vadd.s32 %v1472, %v1463
    %v1474 = vand.u32 %v1451, 65535
    %v1475 = vshrl.u32 %v1451, 16
    %v1476 = vand.u32 %v1446, 65535
    %v1477 = vshrl.u32 %v1446, 16
    %v1478 = vmul.u32 %v1474, %v1476
    %v1479 = vmul.u32 %v1474, %v1477
    %v1480 = vmul.u32 %v1475, %v1476
    %v1481 = vmul.u32 %v1475, %v1477
    %v1482 = vshll.u32 %v1479, 16
    %v1483 = vshrl.u32 %v1479, 16
    %v1484 = vshll.u32 %v1480, 16
    %v1485 = vshrl.u32 %v1480, 16
    %vm1486 = vc.u32 %v1478, %v1482
    %v1487 = vsel %vm1486, 1, 0
    %v1488 = vadd.s32 %v1478, %v1482
    %v1489 = vadd.s32 %v1481, %v1487
    %vm1490 = vc.u32 %v1488, %v1484
    %v1491 = vsel %vm1490, 1, 0
    %v1492 = vadd.s32 %v1488, %v1484
    %v1493 = vadd.s32 %v1489, %v1491
    %v1494 = vadd.s32 %v1493, %v1483
    %v1495 = vadd.s32 %v1494, %v1485
    %v1496 = vmul.u32 %v1451, %v1442
    %v1497 = vadd.s32 %v1473, %v1492
    %vm1498 = vc.u32 %v1473, %v1492
    %v1499 = vadd.s32 %v1495, 1
    %v1500 = vsel %vm1498, %v1499, %v1495
    %v1501 = vadd.s32 %v1496, %v1500
    %v1502 = vadd.s32 %v1501, 536870912
    %v1503 = vshrl.u32 %v1502, 30
    %v1504 = vshll.u32 %v1503, 30
    %v1505 = vsub.s32 %v1501, %v1504
    %vm1506 = vcmp.lt.s32.totalorder %v1505, 0
    %v1507 = vsub.s32 0, %v1505
    %v1508 = vsel %vm1506, %v1507, %v1505
    %v1509 = vclz %v1508
    %v1510 = vsub.s32 %v1509, 2
    %vm1511 = vcmp.gt.s32.totalorder 0, %v1510
    %v1512 = vsel %vm1511, 0, %v1510
    %v1513 = vsub.s32 32, %v1512
    %v1514 = vshll.u32 %v1505, %v1512
    %v1515 = vshrl.u32 %v1497, %v1513
    %v1516 = vor.u32 %v1514, %v1515
    %v1517 = vsub.s32 4294967266, %v1512
    %v1518 = vadd.s32 %v1517, 127
    %v1519 = vshll.u32 %v1518, 23
    %v1520 = vor.u32 4788187, %v1519
    %v1521 = vand.u32 2147483647, %v1520
    %v1523 = vcvt.s32.f32 %v1516
    %v1524 = vmul.f32 %v1523, %v1521
    %v1525 = vxor.u32 %v1524, 2147483648
    %v1526 = vsel %vm1405, %v1525, %v1524
    %v1527 = vsub.s32 4, %v1503
    %v1528 = vsel %vm1405, %v1527, %v1503
    %v1529 = vsel %vm1404, %v155, %v1526
    %v1530 = vsel %vm1404, 0, %v1528
    %v1531 = vmul.f32 %v1529, %v1529
    %v1532 = vmul.f32 %v1531, -0.001358992
    %v1533 = vadd.f32 %v1532, 0.041655596
    %v1534 = vmul.f32 %v1531, %v1533
    %v1535 = vadd.f32 %v1534, -0.4999988
    %v1536 = vmul.f32 %v1531, %v1535
    %v1537 = vadd.f32 1.0, %v1536
    %v1538 = vmul.f32 %v1529, %v1529
    %v1539 = vmul.f32 %v1538, -0.00019511016
    %v1540 = vadd.f32 %v1539, 0.008332121
    %v1541 = vmul.f32 %v1538, %v1540
    %v1542 = vadd.f32 %v1541, -0.16666654
    %v1543 = vmul.f32 %v1538, %v1542
    %v1544 = vadd.f32 %v1543, 1.0
    %v1545 = vmul.f32 %v1544, %v1529
    %vm1546 = vweird.f32 %v155
    %v1547 = vadd.s32 %v1530, 3
    %v1548 = vand.u32 %v1547, 3
    %vm1549 = vcmp.lt.s32.totalorder %v1548, 2
    %vm1550 = vcmp.eq.s32.totalorder %v1548, 0
    %v1551 = vxor.u32 %v1545, 2147483648
    %v1552 = vsel %vm1550, %v1537, %v1551
    %vm1553 = vcmp.eq.s32.totalorder %v1548, 2
    %v1554 = vxor.u32 %v1537, 2147483648
    %v1555 = vsel %vm1553, %v1554, %v1545
    %v1556 = vsel %vm1549, %v1552, %v1555
    %v1557 = vsel %vm1546, nan, %v1556
    %v1558 = vand.u32 2147483647, %v156
    %vm1559 = vcmp.le.f32.partialorder %v1558, 0.7853982
    %vm1560 = vcmp.lt.s32.totalorder %v156, 0
    %v1561 = vand.u32 %v156, 2139095040
    %v1562 = vshrl.u32 %v1561, 23
    %v1563 = vsub.s32 %v1562, 127
    %v1564 = vand.u32 2147483647, %v156
    %v1565 = vand.u32 %v1564, 8388607
    %v1566 = vor.u32 %v1565, 8388608
    %v1567 = vsub.s32 0, %v1566
    %v1568 = vadd.s32 %v1563, 1
    %vm1569 = vcmp.gt.s32.totalorder %v1568, 0
    %v1570 = vsel %vm1569, %v1568, 0
    %v1571 = vshrl.u32 %v1570, 5
    %v1572 = vand.u32 %v1570, 31
    %v1573 = vsub.s32 32, %v1572
    %v1574 = vshrl.u32 683565275, %v1573
    %v1575 = vshll.u32 683565275, %v1572
    %v1576 = vshrl.u32 2475754826, %v1573
    %v1577 = vor.u32 %v1575, %v1576
    %v1578 = vshll.u32 2475754826, %v1572
    %v1579 = vshrl.u32 2131351028, %v1573
    %v1580 = vor.u32 %v1578, %v1579
    %v1581 = vshll.u32 2131351028, %v1572
    %v1582 = vshrl.u32 2102212464, %v1573
    %v1583 = vor.u32 %v1581, %v1582
    %v1584 = vshll.u32 2102212464, %v1572
    %v1585 = vshrl.u32 920167782, %v1573
    %v1586 = vor.u32 %v1584, %v1585
    %v1587 = vshll.u32 920167782, %v1572
    %v1588 = vshrl.u32 1326507024, %v1573
    %v1589 = vor.u32 %v1587, %v1588
    %vm1590 = vcmp.lt.s32.totalorder %v1571, 1
    %vm1591 = vcmp.lt.s32.totalorder %v1571, 2
    %vm1592 = vcmp.lt.s32.totalorder %v1571, 3
    %vm1593 = vcmp.lt.s32.totalorder %v1571, 4
    %v1594 = vsel %vm1590, %v1574, %v1577
    %v1595 = vsel %vm1593, %v1583, 2102212464
    %v1596 = vsel %vm1592, %v1580, %v1595
    %v1597 = vsel %vm1591, %v1594, %v1596
    %v1598 = vsel %vm1590, %v1577, %v1580
    %v1599 = vsel %vm1593, %v1586, 920167782
    %v1600 = vsel %vm1592, %v1583, %v1599
    %v1601 = vsel %vm1591, %v1598, %v1600
    %v1602 = vsel %vm1590, %v1580, %v1583
    %v1603 = vsel %vm1593, %v1589, 1326507024
    %v1604 = vsel %vm1592, %v1586, %v1603
    %v1605 = vsel %vm1591, %v1602, %v1604
    %v1606 = vshll.u32 %v1566, 8
    %v1607 = vand.u32 %v1606, 65535
    %v1608 = vshrl.u32 %v1606, 16
    %v1609 = vand.u32 %v1605, 65535
    %v1610 = vshrl.u32 %v1605, 16
    %v1611 = vmul.u32 %v1607, %v1609
    %v1612 = vmul.u32 %v1607, %v1610
    %v1613 = vmul.u32 %v1608, %v1609
    %v1614 = vmul.u32 %v1608, %v1610
    %v1615 = vshll.u32 %v1612, 16
    %v1616 = vshrl.u32 %v1612, 16
    %v1617 = vshll.u32 %v1613, 16
    %v1618 = vshrl.u32 %v1613, 16
    %vm1619 = vc.u32 %v1611, %v1615
    %v1620 = vsel %vm1619, 1, 0
    %v1621 = vadd.s32 %v1611, %v1615
    %v1622 = vadd.s32 %v1614, %v1620
    %vm1623 = vc.u32 %v1621, %v1617
    %v1624 = vsel %vm1623, 1, 0
    %v1625 = vadd.s32 %v1621, %v1617
    %v1626 = vadd.s32 %v1622, %v1624
    %v1627 = vadd.s32 %v1626, %v1616
    %v1628 = vadd.s32 %v1627, %v1618
    %v1629 = vand.u32 %v1606, 65535
    %v1630 = vshrl.u32 %v1606, 16
    %v1631 = vand.u32 %v1601, 65535
    %v1632 = vshrl.u32 %v1601, 16
    %v1633 = vmul.u32 %v1629, %v1631
    %v1634 = vmul.u32 %v1629, %v1632
    %v1635 = vmul.u32 %v1630, %v1631
    %v1636 = vmul.u32 %v1630, %v1632
    %v1637 = vshll.u32 %v1634, 16
    %v1638 = vshrl.u32 %v1634, 16
    %v1639 = vshll.u32 %v1635, 16
    %v1640 = vshrl.u32 %v1635, 16
    %vm1641 = vc.u32 %v1633, %v1637
    %v1642 = vsel %vm1641, 1, 0
    %v1643 = vadd.s32 %v1633, %v1637
    %v1644 = vadd.s32 %v1636, %v1642
    %vm1645 = vc.u32 %v1643, %v1639
    %v1646 = vsel %vm1645, 1, 0
    %v1647 = vadd.s32 %v1643, %v1639
    %v1648 = vadd.s32 %v1644, %v1646
    %v1649 = vadd.s32 %v1648, %v1638
    %v1650 = vadd.s32 %v1649, %v1640
    %v1651 = vmul.u32 %v1606, %v1597
    %v1652 = vadd.s32 %v1628, %v1647
    %vm1653 = vc.u32 %v1628, %v1647
    %v1654 = vadd.s32 %v1650, 1
    %v1655 = vsel %vm1653, %v1654, %v1650
    %v1656 = vadd.s32 %v1651, %v1655
    %v1657 = vadd.s32 %v1656, 536870912
    %v1658 = vshrl.u32 %v1657, 30
    %v1659 = vshll.u32 %v1658, 30
    %v1660 = vsub.s32 %v1656, %v1659
    %vm1661 = vcmp.lt.s32.totalorder %v1660, 0
    %v1662 = vsub.s32 0, %v1660
    %v1663 = vsel %vm1661, %v1662, %v1660
    %v1664 = vclz %v1663
    %v1665 = vsub.s32 %v1664, 2
    %vm1666 = vcmp.gt.s32.totalorder 0, %v1665
    %v1667 = vsel %vm1666, 0, %v1665
    %v1668 = vsub.s32 32, %v1667
    %v1669 = vshll.u32 %v1660, %v1667
    %v1670 = vshrl.u32 %v1652, %v1668
    %v1671 = vor.u32 %v1669, %v1670
    %v1672 = vsub.s32 4294967266, %v1667
    %v1673 = vadd.s32 %v1672, 127
    %v1674 = vshll.u32 %v1673, 23
    %v1675 = vor.u32 4788187, %v1674
    %v1676 = vand.u32 2147483647, %v1675
    %v1678 = vcvt.s32.f32 %v1671
    %v1679 = vmul.f32 %v1678, %v1676
    %v1680 = vxor.u32 %v1679, 2147483648
    %v1681 = vsel %vm1560, %v1680, %v1679
    %v1682 = vsub.s32 4, %v1658
    %v1683 = vsel %vm1560, %v1682, %v1658
    %v1684 = vsel %vm1559, %v156, %v1681
    %v1685 = vsel %vm1559, 0, %v1683
    %v1686 = vmul.f32 %v1684, %v1684
    %v1687 = vmul.f32 %v1686, -0.001358992
    %v1688 = vadd.f32 %v1687, 0.041655596
    %v1689 = vmul.f32 %v1686, %v1688
    %v1690 = vadd.f32 %v1689, -0.4999988
    %v1691 = vmul.f32 %v1686, %v1690
    %v1692 = vadd.f32 1.0, %v1691
    %v1693 = vmul.f32 %v1684, %v1684
    %v1694 = vmul.f32 %v1693, -0.00019511016
    %v1695 = vadd.f32 %v1694, 0.008332121
    %v1696 = vmul.f32 %v1693, %v1695
    %v1697 = vadd.f32 %v1696, -0.16666654
    %v1698 = vmul.f32 %v1693, %v1697
    %v1699 = vadd.f32 %v1698, 1.0
    %v1700 = vmul.f32 %v1699, %v1684
    %vm1701 = vweird.f32 %v156
    %v1702 = vadd.s32 %v1685, 3
    %v1703 = vand.u32 %v1702, 3
    %vm1704 = vcmp.lt.s32.totalorder %v1703, 2
    %vm1705 = vcmp.eq.s32.totalorder %v1703, 0
    %v1706 = vxor.u32 %v1700, 2147483648
    %v1707 = vsel %vm1705, %v1692, %v1706
    %vm1708 = vcmp.eq.s32.totalorder %v1703, 2
    %v1709 = vxor.u32 %v1692, 2147483648
    %v1710 = vsel %vm1708, %v1709, %v1700
    %v1711 = vsel %vm1704, %v1707, %v1710
    %v1712 = vsel %vm1701, nan, %v1711
    %v1713 = vand.u32 2147483647, %v157
    %vm1714 = vcmp.le.f32.partialorder %v1713, 0.7853982
    %vm1715 = vcmp.lt.s32.totalorder %v157, 0
    %v1716 = vand.u32 %v157, 2139095040
    %v1717 = vshrl.u32 %v1716, 23
    %v1718 = vsub.s32 %v1717, 127
    %v1719 = vand.u32 2147483647, %v157
    %v1720 = vand.u32 %v1719, 8388607
    %v1721 = vor.u32 %v1720, 8388608
    %v1722 = vsub.s32 0, %v1721
    %v1723 = vadd.s32 %v1718, 1
    %vm1724 = vcmp.gt.s32.totalorder %v1723, 0
    %v1725 = vsel %vm1724, %v1723, 0
    %v1726 = vshrl.u32 %v1725, 5
    %v1727 = vand.u32 %v1725, 31
    %v1728 = vsub.s32 32, %v1727
    %v1729 = vshrl.u32 683565275, %v1728
    %v1730 = vshll.u32 683565275, %v1727
    %v1731 = vshrl.u32 2475754826, %v1728
    %v1732 = vor.u32 %v1730, %v1731
    %v1733 = vshll.u32 2475754826, %v1727
    %v1734 = vshrl.u32 2131351028, %v1728
    %v1735 = vor.u32 %v1733, %v1734
    %v1736 = vshll.u32 2131351028, %v1727
    %v1737 = vshrl.u32 2102212464, %v1728
    %v1738 = vor.u32 %v1736, %v1737
    %v1739 = vshll.u32 2102212464, %v1727
    %v1740 = vshrl.u32 920167782, %v1728
    %v1741 = vor.u32 %v1739, %v1740
    %v1742 = vshll.u32 920167782, %v1727
    %v1743 = vshrl.u32 1326507024, %v1728
    %v1744 = vor.u32 %v1742, %v1743
    %vm1745 = vcmp.lt.s32.totalorder %v1726, 1
    %vm1746 = vcmp.lt.s32.totalorder %v1726, 2
    %vm1747 = vcmp.lt.s32.totalorder %v1726, 3
    %vm1748 = vcmp.lt.s32.totalorder %v1726, 4
    %v1749 = vsel %vm1745, %v1729, %v1732
    %v1750 = vsel %vm1748, %v1738, 2102212464
    %v1751 = vsel %vm1747, %v1735, %v1750
    %v1752 = vsel %vm1746, %v1749, %v1751
    %v1753 = vsel %vm1745, %v1732, %v1735
    %v1754 = vsel %vm1748, %v1741, 920167782
    %v1755 = vsel %vm1747, %v1738, %v1754
    %v1756 = vsel %vm1746, %v1753, %v1755
    %v1757 = vsel %vm1745, %v1735, %v1738
    %v1758 = vsel %vm1748, %v1744, 1326507024
    %v1759 = vsel %vm1747, %v1741, %v1758
    %v1760 = vsel %vm1746, %v1757, %v1759
    %v1761 = vshll.u32 %v1721, 8
    %v1762 = vand.u32 %v1761, 65535
    %v1763 = vshrl.u32 %v1761, 16
    %v1764 = vand.u32 %v1760, 65535
    %v1765 = vshrl.u32 %v1760, 16
    %v1766 = vmul.u32 %v1762, %v1764
    %v1767 = vmul.u32 %v1762, %v1765
    %v1768 = vmul.u32 %v1763, %v1764
    %v1769 = vmul.u32 %v1763, %v1765
    %v1770 = vshll.u32 %v1767, 16
    %v1771 = vshrl.u32 %v1767, 16
    %v1772 = vshll.u32 %v1768, 16
    %v1773 = vshrl.u32 %v1768, 16
    %vm1774 = vc.u32 %v1766, %v1770
    %v1775 = vsel %vm1774, 1, 0
    %v1776 = vadd.s32 %v1766, %v1770
    %v1777 = vadd.s32 %v1769, %v1775
    %vm1778 = vc.u32 %v1776, %v1772
    %v1779 = vsel %vm1778, 1, 0
    %v1780 = vadd.s32 %v1776, %v1772
    %v1781 = vadd.s32 %v1777, %v1779
    %v1782 = vadd.s32 %v1781, %v1771
    %v1783 = vadd.s32 %v1782, %v1773
    %v1784 = vand.u32 %v1761, 65535
    %v1785 = vshrl.u32 %v1761, 16
    %v1786 = vand.u32 %v1756, 65535
    %v1787 = vshrl.u32 %v1756, 16
    %v1788 = vmul.u32 %v1784, %v1786
    %v1789 = vmul.u32 %v1784, %v1787
    %v1790 = vmul.u32 %v1785, %v1786
    %v1791 = vmul.u32 %v1785, %v1787
    %v1792 = vshll.u32 %v1789, 16
    %v1793 = vshrl.u32 %v1789, 16
    %v1794 = vshll.u32 %v1790, 16
    %v1795 = vshrl.u32 %v1790, 16
    %vm1796 = vc.u32 %v1788, %v1792
    %v1797 = vsel %vm1796, 1, 0
    %v1798 = vadd.s32 %v1788, %v1792
    %v1799 = vadd.s32 %v1791, %v1797
    %vm1800 = vc.u32 %v1798, %v1794
    %v1801 = vsel %vm1800, 1, 0
    %v1802 = vadd.s32 %v1798, %v1794
    %v1803 = vadd.s32 %v1799, %v1801
    %v1804 = vadd.s32 %v1803, %v1793
    %v1805 = vadd.s32 %v1804, %v1795
    %v1806 = vmul.u32 %v1761, %v1752
    %v1807 = vadd.s32 %v1783, %v1802
    %vm1808 = vc.u32 %v1783, %v1802
    %v1809 = vadd.s32 %v1805, 1
    %v1810 = vsel %vm1808, %v1809, %v1805
    %v1811 = vadd.s32 %v1806, %v1810
    %v1812 = vadd.s32 %v1811, 536870912
    %v1813 = vshrl.u32 %v1812, 30
    %v1814 = vshll.u32 %v1813, 30
    %v1815 = vsub.s32 %v1811, %v1814
    %vm1816 = vcmp.lt.s32.totalorder %v1815, 0
    %v1817 = vsub.s32 0, %v1815
    %v1818 = vsel %vm1816, %v1817, %v1815
    %v1819 = vclz %v1818
    %v1820 = vsub.s32 %v1819, 2
    %vm1821 = vcmp.gt.s32.totalorder 0, %v1820
    %v1822 = vsel %vm1821, 0, %v1820
    %v1823 = vsub.s32 32, %v1822
    %v1824 = vshll.u32 %v1815, %v1822
    %v1825 = vshrl.u32 %v1807, %v1823
    %v1826 = vor.u32 %v1824, %v1825
    %v1827 = vsub.s32 4294967266, %v1822
    %v1828 = vadd.s32 %v1827, 127
    %v1829 = vshll.u32 %v1828, 23
    %v1830 = vor.u32 4788187, %v1829
    %v1831 = vand.u32 2147483647, %v1830
    %v1833 = vcvt.s32.f32 %v1826
    %v1834 = vmul.f32 %v1833, %v1831
    %v1835 = vxor.u32 %v1834, 2147483648
    %v1836 = vsel %vm1715, %v1835, %v1834
    %v1837 = vsub.s32 4, %v1813
    %v1838 = vsel %vm1715, %v1837, %v1813
    %v1839 = vsel %vm1714, %v157, %v1836
    %v1840 = vsel %vm1714, 0, %v1838
    %v1841 = vmul.f32 %v1839, %v1839
    %v1842 = vmul.f32 %v1841, -0.001358992
    %v1843 = vadd.f32 %v1842, 0.041655596
    %v1844 = vmul.f32 %v1841, %v1843
    %v1845 = vadd.f32 %v1844, -0.4999988
    %v1846 = vmul.f32 %v1841, %v1845
    %v1847 = vadd.f32 1.0, %v1846
    %v1848 = vmul.f32 %v1839, %v1839
    %v1849 = vmul.f32 %v1848, -0.00019511016
    %v1850 = vadd.f32 %v1849, 0.008332121
    %v1851 = vmul.f32 %v1848, %v1850
    %v1852 = vadd.f32 %v1851, -0.16666654
    %v1853 = vmul.f32 %v1848, %v1852
    %v1854 = vadd.f32 %v1853, 1.0
    %v1855 = vmul.f32 %v1854, %v1839
    %vm1856 = vweird.f32 %v157
    %v1857 = vadd.s32 %v1840, 3
    %v1858 = vand.u32 %v1857, 3
    %vm1859 = vcmp.lt.s32.totalorder %v1858, 2
    %vm1860 = vcmp.eq.s32.totalorder %v1858, 0
    %v1861 = vxor.u32 %v1855, 2147483648
    %v1862 = vsel %vm1860, %v1847, %v1861
    %vm1863 = vcmp.eq.s32.totalorder %v1858, 2
    %v1864 = vxor.u32 %v1847, 2147483648
    %v1865 = vsel %vm1863, %v1864, %v1855
    %v1866 = vsel %vm1859, %v1862, %v1865
    %v1867 = vsel %vm1856, nan, %v1866
    %v1868 = vand.u32 2147483647, %v158
    %vm1869 = vcmp.le.f32.partialorder %v1868, 0.7853982
    %vm1870 = vcmp.lt.s32.totalorder %v158, 0
    %v1871 = vand.u32 %v158, 2139095040
    %v1872 = vshrl.u32 %v1871, 23
    %v1873 = vsub.s32 %v1872, 127
    %v1874 = vand.u32 2147483647, %v158
    %v1875 = vand.u32 %v1874, 8388607
    %v1876 = vor.u32 %v1875, 8388608
    %v1877 = vsub.s32 0, %v1876
    %v1878 = vadd.s32 %v1873, 1
    %vm1879 = vcmp.gt.s32.totalorder %v1878, 0
    %v1880 = vsel %vm1879, %v1878, 0
    %v1881 = vshrl.u32 %v1880, 5
    %v1882 = vand.u32 %v1880, 31
    %v1883 = vsub.s32 32, %v1882
    %v1884 = vshrl.u32 683565275, %v1883
    %v1885 = vshll.u32 683565275, %v1882
    %v1886 = vshrl.u32 2475754826, %v1883
    %v1887 = vor.u32 %v1885, %v1886
    %v1888 = vshll.u32 2475754826, %v1882
    %v1889 = vshrl.u32 2131351028, %v1883
    %v1890 = vor.u32 %v1888, %v1889
    %v1891 = vshll.u32 2131351028, %v1882
    %v1892 = vshrl.u32 2102212464, %v1883
    %v1893 = vor.u32 %v1891, %v1892
    %v1894 = vshll.u32 2102212464, %v1882
    %v1895 = vshrl.u32 920167782, %v1883
    %v1896 = vor.u32 %v1894, %v1895
    %v1897 = vshll.u32 920167782, %v1882
    %v1898 = vshrl.u32 1326507024, %v1883
    %v1899 = vor.u32 %v1897, %v1898
    %vm1900 = vcmp.lt.s32.totalorder %v1881, 1
    %vm1901 = vcmp.lt.s32.totalorder %v1881, 2
    %vm1902 = vcmp.lt.s32.totalorder %v1881, 3
    %vm1903 = vcmp.lt.s32.totalorder %v1881, 4
    %v1904 = vsel %vm1900, %v1884, %v1887
    %v1905 = vsel %vm1903, %v1893, 2102212464
    %v1906 = vsel %vm1902, %v1890, %v1905
    %v1907 = vsel %vm1901, %v1904, %v1906
    %v1908 = vsel %vm1900, %v1887, %v1890
    %v1909 = vsel %vm1903, %v1896, 920167782
    %v1910 = vsel %vm1902, %v1893, %v1909
    %v1911 = vsel %vm1901, %v1908, %v1910
    %v1912 = vsel %vm1900, %v1890, %v1893
    %v1913 = vsel %vm1903, %v1899, 1326507024
    %v1914 = vsel %vm1902, %v1896, %v1913
    %v1915 = vsel %vm1901, %v1912, %v1914
    %v1916 = vshll.u32 %v1876, 8
    %v1917 = vand.u32 %v1916, 65535
    %v1918 = vshrl.u32 %v1916, 16
    %v1919 = vand.u32 %v1915, 65535
    %v1920 = vshrl.u32 %v1915, 16
    %v1921 = vmul.u32 %v1917, %v1919
    %v1922 = vmul.u32 %v1917, %v1920
    %v1923 = vmul.u32 %v1918, %v1919
    %v1924 = vmul.u32 %v1918, %v1920
    %v1925 = vshll.u32 %v1922, 16
    %v1926 = vshrl.u32 %v1922, 16
    %v1927 = vshll.u32 %v1923, 16
    %v1928 = vshrl.u32 %v1923, 16
    %vm1929 = vc.u32 %v1921, %v1925
    %v1930 = vsel %vm1929, 1, 0
    %v1931 = vadd.s32 %v1921, %v1925
    %v1932 = vadd.s32 %v1924, %v1930
    %vm1933 = vc.u32 %v1931, %v1927
    %v1934 = vsel %vm1933, 1, 0
    %v1935 = vadd.s32 %v1931, %v1927
    %v1936 = vadd.s32 %v1932, %v1934
    %v1937 = vadd.s32 %v1936, %v1926
    %v1938 = vadd.s32 %v1937, %v1928
    %v1939 = vand.u32 %v1916, 65535
    %v1940 = vshrl.u32 %v1916, 16
    %v1941 = vand.u32 %v1911, 65535
    %v1942 = vshrl.u32 %v1911, 16
    %v1943 = vmul.u32 %v1939, %v1941
    %v1944 = vmul.u32 %v1939, %v1942
    %v1945 = vmul.u32 %v1940, %v1941
    %v1946 = vmul.u32 %v1940, %v1942
    %v1947 = vshll.u32 %v1944, 16
    %v1948 = vshrl.u32 %v1944, 16
    %v1949 = vshll.u32 %v1945, 16
    %v1950 = vshrl.u32 %v1945, 16
    %vm1951 = vc.u32 %v1943, %v1947
    %v1952 = vsel %vm1951, 1, 0
    %v1953 = vadd.s32 %v1943, %v1947
    %v1954 = vadd.s32 %v1946, %v1952
    %vm1955 = vc.u32 %v1953, %v1949
    %v1956 = vsel %vm1955, 1, 0
    %v1957 = vadd.s32 %v1953, %v1949
    %v1958 = vadd.s32 %v1954, %v1956
    %v1959 = vadd.s32 %v1958, %v1948
    %v1960 = vadd.s32 %v1959, %v1950
    %v1961 = vmul.u32 %v1916, %v1907
    %v1962 = vadd.s32 %v1938, %v1957
    %vm1963 = vc.u32 %v1938, %v1957
    %v1964 = vadd.s32 %v1960, 1
    %v1965 = vsel %vm1963, %v1964, %v1960
    %v1966 = vadd.s32 %v1961, %v1965
    %v1967 = vadd.s32 %v1966, 536870912
    %v1968 = vshrl.u32 %v1967, 30
    %v1969 = vshll.u32 %v1968, 30
    %v1970 = vsub.s32 %v1966, %v1969
    %vm1971 = vcmp.lt.s32.totalorder %v1970, 0
    %v1972 = vsub.s32 0, %v1970
    %v1973 = vsel %vm1971, %v1972, %v1970
    %v1974 = vclz %v1973
    %v1975 = vsub.s32 %v1974, 2
    %vm1976 = vcmp.gt.s32.totalorder 0, %v1975
    %v1977 = vsel %vm1976, 0, %v1975
    %v1978 = vsub.s32 32, %v1977
    %v1979 = vshll.u32 %v1970, %v1977
    %v1980 = vshrl.u32 %v1962, %v1978
    %v1981 = vor.u32 %v1979, %v1980
    %v1982 = vsub.s32 4294967266, %v1977
    %v1983 = vadd.s32 %v1982, 127
    %v1984 = vshll.u32 %v1983, 23
    %v1985 = vor.u32 4788187, %v1984
    %v1986 = vand.u32 2147483647, %v1985
    %v1988 = vcvt.s32.f32 %v1981
    %v1989 = vmul.f32 %v1988, %v1986
    %v1990 = vxor.u32 %v1989, 2147483648
    %v1991 = vsel %vm1870, %v1990, %v1989
    %v1992 = vsub.s32 4, %v1968
    %v1993 = vsel %vm1870, %v1992, %v1968
    %v1994 = vsel %vm1869, %v158, %v1991
    %v1995 = vsel %vm1869, 0, %v1993
    %v1996 = vmul.f32 %v1994, %v1994
    %v1997 = vmul.f32 %v1996, -0.001358992
    %v1998 = vadd.f32 %v1997, 0.041655596
    %v1999 = vmul.f32 %v1996, %v1998
    %v2000 = vadd.f32 %v1999, -0.4999988
    %v2001 = vmul.f32 %v1996, %v2000
    %v2002 = vadd.f32 1.0, %v2001
    %v2003 = vmul.f32 %v1994, %v1994
    %v2004 = vmul.f32 %v2003, -0.00019511016
    %v2005 = vadd.f32 %v2004, 0.008332121
    %v2006 = vmul.f32 %v2003, %v2005
    %v2007 = vadd.f32 %v2006, -0.16666654
    %v2008 = vmul.f32 %v2003, %v2007
    %v2009 = vadd.f32 %v2008, 1.0
    %v2010 = vmul.f32 %v2009, %v1994
    %vm2011 = vweird.f32 %v158
    %v2012 = vadd.s32 %v1995, 3
    %v2013 = vand.u32 %v2012, 3
    %vm2014 = vcmp.lt.s32.totalorder %v2013, 2
    %vm2015 = vcmp.eq.s32.totalorder %v2013, 0
    %v2016 = vxor.u32 %v2010, 2147483648
    %v2017 = vsel %vm2015, %v2002, %v2016
    %vm2018 = vcmp.eq.s32.totalorder %v2013, 2
    %v2019 = vxor.u32 %v2002, 2147483648
    %v2020 = vsel %vm2018, %v2019, %v2010
    %v2021 = vsel %vm2014, %v2017, %v2020
    %v2022 = vsel %vm2011, nan, %v2021
    %v2023 = vand.u32 2147483647, %v159
    %vm2024 = vcmp.le.f32.partialorder %v2023, 0.7853982
    %vm2025 = vcmp.lt.s32.totalorder %v159, 0
    %v2026 = vand.u32 %v159, 2139095040
    %v2027 = vshrl.u32 %v2026, 23
    %v2028 = vsub.s32 %v2027, 127
    %v2029 = vand.u32 2147483647, %v159
    %v2030 = vand.u32 %v2029, 8388607
    %v2031 = vor.u32 %v2030, 8388608
    %v2032 = vsub.s32 0, %v2031
    %v2033 = vadd.s32 %v2028, 1
    %vm2034 = vcmp.gt.s32.totalorder %v2033, 0
    %v2035 = vsel %vm2034, %v2033, 0
    %v2036 = vshrl.u32 %v2035, 5
    %v2037 = vand.u32 %v2035, 31
    %v2038 = vsub.s32 32, %v2037
    %v2039 = vshrl.u32 683565275, %v2038
    %v2040 = vshll.u32 683565275, %v2037
    %v2041 = vshrl.u32 2475754826, %v2038
    %v2042 = vor.u32 %v2040, %v2041
    %v2043 = vshll.u32 2475754826, %v2037
    %v2044 = vshrl.u32 2131351028, %v2038
    %v2045 = vor.u32 %v2043, %v2044
    %v2046 = vshll.u32 2131351028, %v2037
    %v2047 = vshrl.u32 2102212464, %v2038
    %v2048 = vor.u32 %v2046, %v2047
    %v2049 = vshll.u32 2102212464, %v2037
    %v2050 = vshrl.u32 920167782, %v2038
    %v2051 = vor.u32 %v2049, %v2050
    %v2052 = vshll.u32 920167782, %v2037
    %v2053 = vshrl.u32 1326507024, %v2038
    %v2054 = vor.u32 %v2052, %v2053
    %vm2055 = vcmp.lt.s32.totalorder %v2036, 1
    %vm2056 = vcmp.lt.s32.totalorder %v2036, 2
    %vm2057 = vcmp.lt.s32.totalorder %v2036, 3
    %vm2058 = vcmp.lt.s32.totalorder %v2036, 4
    %v2059 = vsel %vm2055, %v2039, %v2042
    %v2060 = vsel %vm2058, %v2048, 2102212464
    %v2061 = vsel %vm2057, %v2045, %v2060
    %v2062 = vsel %vm2056, %v2059, %v2061
    %v2063 = vsel %vm2055, %v2042, %v2045
    %v2064 = vsel %vm2058, %v2051, 920167782
    %v2065 = vsel %vm2057, %v2048, %v2064
    %v2066 = vsel %vm2056, %v2063, %v2065
    %v2067 = vsel %vm2055, %v2045, %v2048
    %v2068 = vsel %vm2058, %v2054, 1326507024
    %v2069 = vsel %vm2057, %v2051, %v2068
    %v2070 = vsel %vm2056, %v2067, %v2069
    %v2071 = vshll.u32 %v2031, 8
    %v2072 = vand.u32 %v2071, 65535
    %v2073 = vshrl.u32 %v2071, 16
    %v2074 = vand.u32 %v2070, 65535
    %v2075 = vshrl.u32 %v2070, 16
    %v2076 = vmul.u32 %v2072, %v2074
    %v2077 = vmul.u32 %v2072, %v2075
    %v2078 = vmul.u32 %v2073, %v2074
    %v2079 = vmul.u32 %v2073, %v2075
    %v2080 = vshll.u32 %v2077, 16
    %v2081 = vshrl.u32 %v2077, 16
    %v2082 = vshll.u32 %v2078, 16
    %v2083 = vshrl.u32 %v2078, 16
    %vm2084 = vc.u32 %v2076, %v2080
    %v2085 = vsel %vm2084, 1, 0
    %v2086 = vadd.s32 %v2076, %v2080
    %v2087 = vadd.s32 %v2079, %v2085
    %vm2088 = vc.u32 %v2086, %v2082
    %v2089 = vsel %vm2088, 1, 0
    %v2090 = vadd.s32 %v2086, %v2082
    %v2091 = vadd.s32 %v2087, %v2089
    %v2092 = vadd.s32 %v2091, %v2081
    %v2093 = vadd.s32 %v2092, %v2083
    %v2094 = vand.u32 %v2071, 65535
    %v2095 = vshrl.u32 %v2071, 16
    %v2096 = vand.u32 %v2066, 65535
    %v2097 = vshrl.u32 %v2066, 16
    %v2098 = vmul.u32 %v2094, %v2096
    %v2099 = vmul.u32 %v2094, %v2097
    %v2100 = vmul.u32 %v2095, %v2096
    %v2101 = vmul.u32 %v2095, %v2097
    %v2102 = vshll.u32 %v2099, 16
    %v2103 = vshrl.u32 %v2099, 16
    %v2104 = vshll.u32 %v2100, 16
    %v2105 = vshrl.u32 %v2100, 16
    %vm2106 = vc.u32 %v2098, %v2102
    %v2107 = vsel %vm2106, 1, 0
    %v2108 = vadd.s32 %v2098, %v2102
    %v2109 = vadd.s32 %v2101, %v2107
    %vm2110 = vc.u32 %v2108, %v2104
    %v2111 = vsel %vm2110, 1, 0
    %v2112 = vadd.s32 %v2108, %v2104
    %v2113 = vadd.s32 %v2109, %v2111
    %v2114 = vadd.s32 %v2113, %v2103
    %v2115 = vadd.s32 %v2114, %v2105
    %v2116 = vmul.u32 %v2071, %v2062
    %v2117 = vadd.s32 %v2093, %v2112
    %vm2118 = vc.u32 %v2093, %v2112
    %v2119 = vadd.s32 %v2115, 1
    %v2120 = vsel %vm2118, %v2119, %v2115
    %v2121 = vadd.s32 %v2116, %v2120
    %v2122 = vadd.s32 %v2121, 536870912
    %v2123 = vshrl.u32 %v2122, 30
    %v2124 = vshll.u32 %v2123, 30
    %v2125 = vsub.s32 %v2121, %v2124
    %vm2126 = vcmp.lt.s32.totalorder %v2125, 0
    %v2127 = vsub.s32 0, %v2125
    %v2128 = vsel %vm2126, %v2127, %v2125
    %v2129 = vclz %v2128
    %v2130 = vsub.s32 %v2129, 2
    %vm2131 = vcmp.gt.s32.totalorder 0, %v2130
    %v2132 = vsel %vm2131, 0, %v2130
    %v2133 = vsub.s32 32, %v2132
    %v2134 = vshll.u32 %v2125, %v2132
    %v2135 = vshrl.u32 %v2117, %v2133
    %v2136 = vor.u32 %v2134, %v2135
    %v2137 = vsub.s32 4294967266, %v2132
    %v2138 = vadd.s32 %v2137, 127
    %v2139 = vshll.u32 %v2138, 23
    %v2140 = vor.u32 4788187, %v2139
    %v2141 = vand.u32 2147483647, %v2140
    %v2143 = vcvt.s32.f32 %v2136
    %v2144 = vmul.f32 %v2143, %v2141
    %v2145 = vxor.u32 %v2144, 2147483648
    %v2146 = vsel %vm2025, %v2145, %v2144
    %v2147 = vsub.s32 4, %v2123
    %v2148 = vsel %vm2025, %v2147, %v2123
    %v2149 = vsel %vm2024, %v159, %v2146
    %v2150 = vsel %vm2024, 0, %v2148
    %v2151 = vmul.f32 %v2149, %v2149
    %v2152 = vmul.f32 %v2151, -0.001358992
    %v2153 = vadd.f32 %v2152, 0.041655596
    %v2154 = vmul.f32 %v2151, %v2153
    %v2155 = vadd.f32 %v2154, -0.4999988
    %v2156 = vmul.f32 %v2151, %v2155
    %v2157 = vadd.f32 1.0, %v2156
    %v2158 = vmul.f32 %v2149, %v2149
    %v2159 = vmul.f32 %v2158, -0.00019511016
    %v2160 = vadd.f32 %v2159, 0.008332121
    %v2161 = vmul.f32 %v2158, %v2160
    %v2162 = vadd.f32 %v2161, -0.16666654
    %v2163 = vmul.f32 %v2158, %v2162
    %v2164 = vadd.f32 %v2163, 1.0
    %v2165 = vmul.f32 %v2164, %v2149
    %vm2166 = vweird.f32 %v159
    %v2167 = vadd.s32 %v2150, 3
    %v2168 = vand.u32 %v2167, 3
    %vm2169 = vcmp.lt.s32.totalorder %v2168, 2
    %vm2170 = vcmp.eq.s32.totalorder %v2168, 0
    %v2171 = vxor.u32 %v2165, 2147483648
    %v2172 = vsel %vm2170, %v2157, %v2171
    %vm2173 = vcmp.eq.s32.totalorder %v2168, 2
    %v2174 = vxor.u32 %v2157, 2147483648
    %v2175 = vsel %vm2173, %v2174, %v2165
    %v2176 = vsel %vm2169, %v2172, %v2175
    %v2177 = vsel %vm2166, nan, %v2176
    %v2178 = vand.u32 2147483647, %v160
    %vm2179 = vcmp.le.f32.partialorder %v2178, 0.7853982
    %vm2180 = vcmp.lt.s32.totalorder %v160, 0
    %v2181 = vand.u32 %v160, 2139095040
    %v2182 = vshrl.u32 %v2181, 23
    %v2183 = vsub.s32 %v2182, 127
    %v2184 = vand.u32 2147483647, %v160
    %v2185 = vand.u32 %v2184, 8388607
    %v2186 = vor.u32 %v2185, 8388608
    %v2187 = vsub.s32 0, %v2186
    %v2188 = vadd.s32 %v2183, 1
    %vm2189 = vcmp.gt.s32.totalorder %v2188, 0
    %v2190 = vsel %vm2189, %v2188, 0
    %v2191 = vshrl.u32 %v2190, 5
    %v2192 = vand.u32 %v2190, 31
    %v2193 = vsub.s32 32, %v2192
    %v2194 = vshrl.u32 683565275, %v2193
    %v2195 = vshll.u32 683565275, %v2192
    %v2196 = vshrl.u32 2475754826, %v2193
    %v2197 = vor.u32 %v2195, %v2196
    %v2198 = vshll.u32 2475754826, %v2192
    %v2199 = vshrl.u32 2131351028, %v2193
    %v2200 = vor.u32 %v2198, %v2199
    %v2201 = vshll.u32 2131351028, %v2192
    %v2202 = vshrl.u32 2102212464, %v2193
    %v2203 = vor.u32 %v2201, %v2202
    %v2204 = vshll.u32 2102212464, %v2192
    %v2205 = vshrl.u32 920167782, %v2193
    %v2206 = vor.u32 %v2204, %v2205
    %v2207 = vshll.u32 920167782, %v2192
    %v2208 = vshrl.u32 1326507024, %v2193
    %v2209 = vor.u32 %v2207, %v2208
    %vm2210 = vcmp.lt.s32.totalorder %v2191, 1
    %vm2211 = vcmp.lt.s32.totalorder %v2191, 2
    %vm2212 = vcmp.lt.s32.totalorder %v2191, 3
    %vm2213 = vcmp.lt.s32.totalorder %v2191, 4
    %v2214 = vsel %vm2210, %v2194, %v2197
    %v2215 = vsel %vm2213, %v2203, 2102212464
    %v2216 = vsel %vm2212, %v2200, %v2215
    %v2217 = vsel %vm2211, %v2214, %v2216
    %v2218 = vsel %vm2210, %v2197, %v2200
    %v2219 = vsel %vm2213, %v2206, 920167782
    %v2220 = vsel %vm2212, %v2203, %v2219
    %v2221 = vsel %vm2211, %v2218, %v2220
    %v2222 = vsel %vm2210, %v2200, %v2203
    %v2223 = vsel %vm2213, %v2209, 1326507024
    %v2224 = vsel %vm2212, %v2206, %v2223
    %v2225 = vsel %vm2211, %v2222, %v2224
    %v2226 = vshll.u32 %v2186, 8
    %v2227 = vand.u32 %v2226, 65535
    %v2228 = vshrl.u32 %v2226, 16
    %v2229 = vand.u32 %v2225, 65535
    %v2230 = vshrl.u32 %v2225, 16
    %v2231 = vmul.u32 %v2227, %v2229
    %v2232 = vmul.u32 %v2227, %v2230
    %v2233 = vmul.u32 %v2228, %v2229
    %v2234 = vmul.u32 %v2228, %v2230
    %v2235 = vshll.u32 %v2232, 16
    %v2236 = vshrl.u32 %v2232, 16
    %v2237 = vshll.u32 %v2233, 16
    %v2238 = vshrl.u32 %v2233, 16
    %vm2239 = vc.u32 %v2231, %v2235
    %v2240 = vsel %vm2239, 1, 0
    %v2241 = vadd.s32 %v2231, %v2235
    %v2242 = vadd.s32 %v2234, %v2240
    %vm2243 = vc.u32 %v2241, %v2237
    %v2244 = vsel %vm2243, 1, 0
    %v2245 = vadd.s32 %v2241, %v2237
    %v2246 = vadd.s32 %v2242, %v2244
    %v2247 = vadd.s32 %v2246, %v2236
    %v2248 = vadd.s32 %v2247, %v2238
    %v2249 = vand.u32 %v2226, 65535
    %v2250 = vshrl.u32 %v2226, 16
    %v2251 = vand.u32 %v2221, 65535
    %v2252 = vshrl.u32 %v2221, 16
    %v2253 = vmul.u32 %v2249, %v2251
    %v2254 = vmul.u32 %v2249, %v2252
    %v2255 = vmul.u32 %v2250, %v2251
    %v2256 = vmul.u32 %v2250, %v2252
    %v2257 = vshll.u32 %v2254, 16
    %v2258 = vshrl.u32 %v2254, 16
    %v2259 = vshll.u32 %v2255, 16
    %v2260 = vshrl.u32 %v2255, 16
    %vm2261 = vc.u32 %v2253, %v2257
    %v2262 = vsel %vm2261, 1, 0
    %v2263 = vadd.s32 %v2253, %v2257
    %v2264 = vadd.s32 %v2256, %v2262
    %vm2265 = vc.u32 %v2263, %v2259
    %v2266 = vsel %vm2265, 1, 0
    %v2267 = vadd.s32 %v2263, %v2259
    %v2268 = vadd.s32 %v2264, %v2266
    %v2269 = vadd.s32 %v2268, %v2258
    %v2270 = vadd.s32 %v2269, %v2260
    %v2271 = vmul.u32 %v2226, %v2217
    %v2272 = vadd.s32 %v2248, %v2267
    %vm2273 = vc.u32 %v2248, %v2267
    %v2274 = vadd.s32 %v2270, 1
    %v2275 = vsel %vm2273, %v2274, %v2270
    %v2276 = vadd.s32 %v2271, %v2275
    %v2277 = vadd.s32 %v2276, 536870912
    %v2278 = vshrl.u32 %v2277, 30
    %v2279 = vshll.u32 %v2278, 30
    %v2280 = vsub.s32 %v2276, %v2279
    %vm2281 = vcmp.lt.s32.totalorder %v2280, 0
    %v2282 = vsub.s32 0, %v2280
    %v2283 = vsel %vm2281, %v2282, %v2280
    %v2284 = vclz %v2283
    %v2285 = vsub.s32 %v2284, 2
    %vm2286 = vcmp.gt.s32.totalorder 0, %v2285
    %v2287 = vsel %vm2286, 0, %v2285
    %v2288 = vsub.s32 32, %v2287
    %v2289 = vshll.u32 %v2280, %v2287
    %v2290 = vshrl.u32 %v2272, %v2288
    %v2291 = vor.u32 %v2289, %v2290
    %v2292 = vsub.s32 4294967266, %v2287
    %v2293 = vadd.s32 %v2292, 127
    %v2294 = vshll.u32 %v2293, 23
    %v2295 = vor.u32 4788187, %v2294
    %v2296 = vand.u32 2147483647, %v2295
    %v2298 = vcvt.s32.f32 %v2291
    %v2299 = vmul.f32 %v2298, %v2296
    %v2300 = vxor.u32 %v2299, 2147483648
    %v2301 = vsel %vm2180, %v2300, %v2299
    %v2302 = vsub.s32 4, %v2278
    %v2303 = vsel %vm2180, %v2302, %v2278
    %v2304 = vsel %vm2179, %v160, %v2301
    %v2305 = vsel %vm2179, 0, %v2303
    %v2306 = vmul.f32 %v2304, %v2304
    %v2307 = vmul.f32 %v2306, -0.001358992
    %v2308 = vadd.f32 %v2307, 0.041655596
    %v2309 = vmul.f32 %v2306, %v2308
    %v2310 = vadd.f32 %v2309, -0.4999988
    %v2311 = vmul.f32 %v2306, %v2310
    %v2312 = vadd.f32 1.0, %v2311
    %v2313 = vmul.f32 %v2304, %v2304
    %v2314 = vmul.f32 %v2313, -0.00019511016
    %v2315 = vadd.f32 %v2314, 0.008332121
    %v2316 = vmul.f32 %v2313, %v2315
    %v2317 = vadd.f32 %v2316, -0.16666654
    %v2318 = vmul.f32 %v2313, %v2317
    %v2319 = vadd.f32 %v2318, 1.0
    %v2320 = vmul.f32 %v2319, %v2304
    %vm2321 = vweird.f32 %v160
    %v2322 = vadd.s32 %v2305, 3
    %v2323 = vand.u32 %v2322, 3
    %vm2324 = vcmp.lt.s32.totalorder %v2323, 2
    %vm2325 = vcmp.eq.s32.totalorder %v2323, 0
    %v2326 = vxor.u32 %v2320, 2147483648
    %v2327 = vsel %vm2325, %v2312, %v2326
    %vm2328 = vcmp.eq.s32.totalorder %v2323, 2
    %v2329 = vxor.u32 %v2312, 2147483648
    %v2330 = vsel %vm2328, %v2329, %v2320
    %v2331 = vsel %vm2324, %v2327, %v2330
    %v2332 = vsel %vm2321, nan, %v2331
    %v2333 = vand.u32 2147483647, %v161
    %vm2334 = vcmp.le.f32.partialorder %v2333, 0.7853982
    %vm2335 = vcmp.lt.s32.totalorder %v161, 0
    %v2336 = vand.u32 %v161, 2139095040
    %v2337 = vshrl.u32 %v2336, 23
    %v2338 = vsub.s32 %v2337, 127
    %v2339 = vand.u32 2147483647, %v161
    %v2340 = vand.u32 %v2339, 8388607
    %v2341 = vor.u32 %v2340, 8388608
    %v2342 = vsub.s32 0, %v2341
    %v2343 = vadd.s32 %v2338, 1
    %vm2344 = vcmp.gt.s32.totalorder %v2343, 0
    %v2345 = vsel %vm2344, %v2343, 0
    %v2346 = vshrl.u32 %v2345, 5
    %v2347 = vand.u32 %v2345, 31
    %v2348 = vsub.s32 32, %v2347
    %v2349 = vshrl.u32 683565275, %v2348
    %v2350 = vshll.u32 683565275, %v2347
    %v2351 = vshrl.u32 2475754826, %v2348
    %v2352 = vor.u32 %v2350, %v2351
    %v2353 = vshll.u32 2475754826, %v2347
    %v2354 = vshrl.u32 2131351028, %v2348
    %v2355 = vor.u32 %v2353, %v2354
    %v2356 = vshll.u32 2131351028, %v2347
    %v2357 = vshrl.u32 2102212464, %v2348
    %v2358 = vor.u32 %v2356, %v2357
    %v2359 = vshll.u32 2102212464, %v2347
    %v2360 = vshrl.u32 920167782, %v2348
    %v2361 = vor.u32 %v2359, %v2360
    %v2362 = vshll.u32 920167782, %v2347
    %v2363 = vshrl.u32 1326507024, %v2348
    %v2364 = vor.u32 %v2362, %v2363
    %vm2365 = vcmp.lt.s32.totalorder %v2346, 1
    %vm2366 = vcmp.lt.s32.totalorder %v2346, 2
    %vm2367 = vcmp.lt.s32.totalorder %v2346, 3
    %vm2368 = vcmp.lt.s32.totalorder %v2346, 4
    %v2369 = vsel %vm2365, %v2349, %v2352
    %v2370 = vsel %vm2368, %v2358, 2102212464
    %v2371 = vsel %vm2367, %v2355, %v2370
    %v2372 = vsel %vm2366, %v2369, %v2371
    %v2373 = vsel %vm2365, %v2352, %v2355
    %v2374 = vsel %vm2368, %v2361, 920167782
    %v2375 = vsel %vm2367, %v2358, %v2374
    %v2376 = vsel %vm2366, %v2373, %v2375
    %v2377 = vsel %vm2365, %v2355, %v2358
    %v2378 = vsel %vm2368, %v2364, 1326507024
    %v2379 = vsel %vm2367, %v2361, %v2378
    %v2380 = vsel %vm2366, %v2377, %v2379
    %v2381 = vshll.u32 %v2341, 8
    %v2382 = vand.u32 %v2381, 65535
    %v2383 = vshrl.u32 %v2381, 16
    %v2384 = vand.u32 %v2380, 65535
    %v2385 = vshrl.u32 %v2380, 16
    %v2386 = vmul.u32 %v2382, %v2384
    %v2387 = vmul.u32 %v2382, %v2385
    %v2388 = vmul.u32 %v2383, %v2384
    %v2389 = vmul.u32 %v2383, %v2385
    %v2390 = vshll.u32 %v2387, 16
    %v2391 = vshrl.u32 %v2387, 16
    %v2392 = vshll.u32 %v2388, 16
    %v2393 = vshrl.u32 %v2388, 16
    %vm2394 = vc.u32 %v2386, %v2390
    %v2395 = vsel %vm2394, 1, 0
    %v2396 = vadd.s32 %v2386, %v2390
    %v2397 = vadd.s32 %v2389, %v2395
    %vm2398 = vc.u32 %v2396, %v2392
    %v2399 = vsel %vm2398, 1, 0
    %v2400 = vadd.s32 %v2396, %v2392
    %v2401 = vadd.s32 %v2397, %v2399
    %v2402 = vadd.s32 %v2401, %v2391
    %v2403 = vadd.s32 %v2402, %v2393
    %v2404 = vand.u32 %v2381, 65535
    %v2405 = vshrl.u32 %v2381, 16
    %v2406 = vand.u32 %v2376, 65535
    %v2407 = vshrl.u32 %v2376, 16
    %v2408 = vmul.u32 %v2404, %v2406
    %v2409 = vmul.u32 %v2404, %v2407
    %v2410 = vmul.u32 %v2405, %v2406
    %v2411 = vmul.u32 %v2405, %v2407
    %v2412 = vshll.u32 %v2409, 16
    %v2413 = vshrl.u32 %v2409, 16
    %v2414 = vshll.u32 %v2410, 16
    %v2415 = vshrl.u32 %v2410, 16
    %vm2416 = vc.u32 %v2408, %v2412
    %v2417 = vsel %vm2416, 1, 0
    %v2418 = vadd.s32 %v2408, %v2412
    %v2419 = vadd.s32 %v2411, %v2417
    %vm2420 = vc.u32 %v2418, %v2414
    %v2421 = vsel %vm2420, 1, 0
    %v2422 = vadd.s32 %v2418, %v2414
    %v2423 = vadd.s32 %v2419, %v2421
    %v2424 = vadd.s32 %v2423, %v2413
    %v2425 = vadd.s32 %v2424, %v2415
    %v2426 = vmul.u32 %v2381, %v2372
    %v2427 = vadd.s32 %v2403, %v2422
    %vm2428 = vc.u32 %v2403, %v2422
    %v2429 = vadd.s32 %v2425, 1
    %v2430 = vsel %vm2428, %v2429, %v2425
    %v2431 = vadd.s32 %v2426, %v2430
    %v2432 = vadd.s32 %v2431, 536870912
    %v2433 = vshrl.u32 %v2432, 30
    %v2434 = vshll.u32 %v2433, 30
    %v2435 = vsub.s32 %v2431, %v2434
    %vm2436 = vcmp.lt.s32.totalorder %v2435, 0
    %v2437 = vsub.s32 0, %v2435
    %v2438 = vsel %vm2436, %v2437, %v2435
    %v2439 = vclz %v2438
    %v2440 = vsub.s32 %v2439, 2
    %vm2441 = vcmp.gt.s32.totalorder 0, %v2440
    %v2442 = vsel %vm2441, 0, %v2440
    %v2443 = vsub.s32 32, %v2442
    %v2444 = vshll.u32 %v2435, %v2442
    %v2445 = vshrl.u32 %v2427, %v2443
    %v2446 = vor.u32 %v2444, %v2445
    %v2447 = vsub.s32 4294967266, %v2442
    %v2448 = vadd.s32 %v2447, 127
    %v2449 = vshll.u32 %v2448, 23
    %v2450 = vor.u32 4788187, %v2449
    %v2451 = vand.u32 2147483647, %v2450
    %v2453 = vcvt.s32.f32 %v2446
    %v2454 = vmul.f32 %v2453, %v2451
    %v2455 = vxor.u32 %v2454, 2147483648
    %v2456 = vsel %vm2335, %v2455, %v2454
    %v2457 = vsub.s32 4, %v2433
    %v2458 = vsel %vm2335, %v2457, %v2433
    %v2459 = vsel %vm2334, %v161, %v2456
    %v2460 = vsel %vm2334, 0, %v2458
    %v2461 = vmul.f32 %v2459, %v2459
    %v2462 = vmul.f32 %v2461, -0.001358992
    %v2463 = vadd.f32 %v2462, 0.041655596
    %v2464 = vmul.f32 %v2461, %v2463
    %v2465 = vadd.f32 %v2464, -0.4999988
    %v2466 = vmul.f32 %v2461, %v2465
    %v2467 = vadd.f32 1.0, %v2466
    %v2468 = vmul.f32 %v2459, %v2459
    %v2469 = vmul.f32 %v2468, -0.00019511016
    %v2470 = vadd.f32 %v2469, 0.008332121
    %v2471 = vmul.f32 %v2468, %v2470
    %v2472 = vadd.f32 %v2471, -0.16666654
    %v2473 = vmul.f32 %v2468, %v2472
    %v2474 = vadd.f32 %v2473, 1.0
    %v2475 = vmul.f32 %v2474, %v2459
    %vm2476 = vweird.f32 %v161
    %v2477 = vadd.s32 %v2460, 3
    %v2478 = vand.u32 %v2477, 3
    %vm2479 = vcmp.lt.s32.totalorder %v2478, 2
    %vm2480 = vcmp.eq.s32.totalorder %v2478, 0
    %v2481 = vxor.u32 %v2475, 2147483648
    %v2482 = vsel %vm2480, %v2467, %v2481
    %vm2483 = vcmp.eq.s32.totalorder %v2478, 2
    %v2484 = vxor.u32 %v2467, 2147483648
    %v2485 = vsel %vm2483, %v2484, %v2475
    %v2486 = vsel %vm2479, %v2482, %v2485
    %v2487 = vsel %vm2476, nan, %v2486
    %v2488 = vand.u32 2147483647, %v162
    %vm2489 = vcmp.le.f32.partialorder %v2488, 0.7853982
    %vm2490 = vcmp.lt.s32.totalorder %v162, 0
    %v2491 = vand.u32 %v162, 2139095040
    %v2492 = vshrl.u32 %v2491, 23
    %v2493 = vsub.s32 %v2492, 127
    %v2494 = vand.u32 2147483647, %v162
    %v2495 = vand.u32 %v2494, 8388607
    %v2496 = vor.u32 %v2495, 8388608
    %v2497 = vsub.s32 0, %v2496
    %v2498 = vadd.s32 %v2493, 1
    %vm2499 = vcmp.gt.s32.totalorder %v2498, 0
    %v2500 = vsel %vm2499, %v2498, 0
    %v2501 = vshrl.u32 %v2500, 5
    %v2502 = vand.u32 %v2500, 31
    %v2503 = vsub.s32 32, %v2502
    %v2504 = vshrl.u32 683565275, %v2503
    %v2505 = vshll.u32 683565275, %v2502
    %v2506 = vshrl.u32 2475754826, %v2503
    %v2507 = vor.u32 %v2505, %v2506
    %v2508 = vshll.u32 2475754826, %v2502
    %v2509 = vshrl.u32 2131351028, %v2503
    %v2510 = vor.u32 %v2508, %v2509
    %v2511 = vshll.u32 2131351028, %v2502
    %v2512 = vshrl.u32 2102212464, %v2503
    %v2513 = vor.u32 %v2511, %v2512
    %v2514 = vshll.u32 2102212464, %v2502
    %v2515 = vshrl.u32 920167782, %v2503
    %v2516 = vor.u32 %v2514, %v2515
    %v2517 = vshll.u32 920167782, %v2502
    %v2518 = vshrl.u32 1326507024, %v2503
    %v2519 = vor.u32 %v2517, %v2518
    %vm2520 = vcmp.lt.s32.totalorder %v2501, 1
    %vm2521 = vcmp.lt.s32.totalorder %v2501, 2
    %vm2522 = vcmp.lt.s32.totalorder %v2501, 3
    %vm2523 = vcmp.lt.s32.totalorder %v2501, 4
    %v2524 = vsel %vm2520, %v2504, %v2507
    %v2525 = vsel %vm2523, %v2513, 2102212464
    %v2526 = vsel %vm2522, %v2510, %v2525
    %v2527 = vsel %vm2521, %v2524, %v2526
    %v2528 = vsel %vm2520, %v2507, %v2510
    %v2529 = vsel %vm2523, %v2516, 920167782
    %v2530 = vsel %vm2522, %v2513, %v2529
    %v2531 = vsel %vm2521, %v2528, %v2530
    %v2532 = vsel %vm2520, %v2510, %v2513
    %v2533 = vsel %vm2523, %v2519, 1326507024
    %v2534 = vsel %vm2522, %v2516, %v2533
    %v2535 = vsel %vm2521, %v2532, %v2534
    %v2536 = vshll.u32 %v2496, 8
    %v2537 = vand.u32 %v2536, 65535
    %v2538 = vshrl.u32 %v2536, 16
    %v2539 = vand.u32 %v2535, 65535
    %v2540 = vshrl.u32 %v2535, 16
    %v2541 = vmul.u32 %v2537, %v2539
    %v2542 = vmul.u32 %v2537, %v2540
    %v2543 = vmul.u32 %v2538, %v2539
    %v2544 = vmul.u32 %v2538, %v2540
    %v2545 = vshll.u32 %v2542, 16
    %v2546 = vshrl.u32 %v2542, 16
    %v2547 = vshll.u32 %v2543, 16
    %v2548 = vshrl.u32 %v2543, 16
    %vm2549 = vc.u32 %v2541, %v2545
    %v2550 = vsel %vm2549, 1, 0
    %v2551 = vadd.s32 %v2541, %v2545
    %v2552 = vadd.s32 %v2544, %v2550
    %vm2553 = vc.u32 %v2551, %v2547
    %v2554 = vsel %vm2553, 1, 0
    %v2555 = vadd.s32 %v2551, %v2547
    %v2556 = vadd.s32 %v2552, %v2554
    %v2557 = vadd.s32 %v2556, %v2546
    %v2558 = vadd.s32 %v2557, %v2548
    %v2559 = vand.u32 %v2536, 65535
    %v2560 = vshrl.u32 %v2536, 16
    %v2561 = vand.u32 %v2531, 65535
    %v2562 = vshrl.u32 %v2531, 16
    %v2563 = vmul.u32 %v2559, %v2561
    %v2564 = vmul.u32 %v2559, %v2562
    %v2565 = vmul.u32 %v2560, %v2561
    %v2566 = vmul.u32 %v2560, %v2562
    %v2567 = vshll.u32 %v2564, 16
    %v2568 = vshrl.u32 %v2564, 16
    %v2569 = vshll.u32 %v2565, 16
    %v2570 = vshrl.u32 %v2565, 16
    %vm2571 = vc.u32 %v2563, %v2567
    %v2572 = vsel %vm2571, 1, 0
    %v2573 = vadd.s32 %v2563, %v2567
    %v2574 = vadd.s32 %v2566, %v2572
    %vm2575 = vc.u32 %v2573, %v2569
    %v2576 = vsel %vm2575, 1, 0
    %v2577 = vadd.s32 %v2573, %v2569
    %v2578 = vadd.s32 %v2574, %v2576
    %v2579 = vadd.s32 %v2578, %v2568
    %v2580 = vadd.s32 %v2579, %v2570
    %v2581 = vmul.u32 %v2536, %v2527
    %v2582 = vadd.s32 %v2558, %v2577
    %vm2583 = vc.u32 %v2558, %v2577
    %v2584 = vadd.s32 %v2580, 1
    %v2585 = vsel %vm2583, %v2584, %v2580
    %v2586 = vadd.s32 %v2581, %v2585
    %v2587 = vadd.s32 %v2586, 536870912
    %v2588 = vshrl.u32 %v2587, 30
    %v2589 = vshll.u32 %v2588, 30
    %v2590 = vsub.s32 %v2586, %v2589
    %vm2591 = vcmp.lt.s32.totalorder %v2590, 0
    %v2592 = vsub.s32 0, %v2590
    %v2593 = vsel %vm2591, %v2592, %v2590
    %v2594 = vclz %v2593
    %v2595 = vsub.s32 %v2594, 2
    %vm2596 = vcmp.gt.s32.totalorder 0, %v2595
    %v2597 = vsel %vm2596, 0, %v2595
    %v2598 = vsub.s32 32, %v2597
    %v2599 = vshll.u32 %v2590, %v2597
    %v2600 = vshrl.u32 %v2582, %v2598
    %v2601 = vor.u32 %v2599, %v2600
    %v2602 = vsub.s32 4294967266, %v2597
    %v2603 = vadd.s32 %v2602, 127
    %v2604 = vshll.u32 %v2603, 23
    %v2605 = vor.u32 4788187, %v2604
    %v2606 = vand.u32 2147483647, %v2605
    %v2608 = vcvt.s32.f32 %v2601
    %v2609 = vmul.f32 %v2608, %v2606
    %v2610 = vxor.u32 %v2609, 2147483648
    %v2611 = vsel %vm2490, %v2610, %v2609
    %v2612 = vsub.s32 4, %v2588
    %v2613 = vsel %vm2490, %v2612, %v2588
    %v2614 = vsel %vm2489, %v162, %v2611
    %v2615 = vsel %vm2489, 0, %v2613
    %v2616 = vmul.f32 %v2614, %v2614
    %v2617 = vmul.f32 %v2616, -0.001358992
    %v2618 = vadd.f32 %v2617, 0.041655596
    %v2619 = vmul.f32 %v2616, %v2618
    %v2620 = vadd.f32 %v2619, -0.4999988
    %v2621 = vmul.f32 %v2616, %v2620
    %v2622 = vadd.f32 1.0, %v2621
    %v2623 = vmul.f32 %v2614, %v2614
    %v2624 = vmul.f32 %v2623, -0.00019511016
    %v2625 = vadd.f32 %v2624, 0.008332121
    %v2626 = vmul.f32 %v2623, %v2625
    %v2627 = vadd.f32 %v2626, -0.16666654
    %v2628 = vmul.f32 %v2623, %v2627
    %v2629 = vadd.f32 %v2628, 1.0
    %v2630 = vmul.f32 %v2629, %v2614
    %vm2631 = vweird.f32 %v162
    %v2632 = vadd.s32 %v2615, 3
    %v2633 = vand.u32 %v2632, 3
    %vm2634 = vcmp.lt.s32.totalorder %v2633, 2
    %vm2635 = vcmp.eq.s32.totalorder %v2633, 0
    %v2636 = vxor.u32 %v2630, 2147483648
    %v2637 = vsel %vm2635, %v2622, %v2636
    %vm2638 = vcmp.eq.s32.totalorder %v2633, 2
    %v2639 = vxor.u32 %v2622, 2147483648
    %v2640 = vsel %vm2638, %v2639, %v2630
    %v2641 = vsel %vm2634, %v2637, %v2640
    %v2642 = vsel %vm2631, nan, %v2641
    %2643 = vst [vmem:[#allocation7] sm:$0xff] %v317
    %2644 = vst [vmem:[#allocation7 + $0x8] sm:$0xff] %v472
    %2645 = vst [vmem:[#allocation7 + $0x10] sm:$0xff] %v627
    %2646 = vst [vmem:[#allocation7 + $0x18] sm:$0xff] %v782
    %2647 = vst [vmem:[#allocation7 + $0x20] sm:$0xff] %v937
    %2648 = vst [vmem:[#allocation7 + $0x28] sm:$0xff] %v1092
    %2649 = vst [vmem:[#allocation7 + $0x30] sm:$0xff] %v1247
    %2650 = vst [vmem:[#allocation7 + $0x38] sm:$0xff] %v1402
    %2651 = vst [vmem:[#allocation7 + $0x40] sm:$0xff] %v1557
    %2652 = vst [vmem:[#allocation7 + $0x48] sm:$0xff] %v1712
    %2653 = vst [vmem:[#allocation7 + $0x50] sm:$0xff] %v1867
    %2654 = vst [vmem:[#allocation7 + $0x58] sm:$0xff] %v2022
    %2655 = vst [vmem:[#allocation7 + $0x60] sm:$0xff] %v2177
    %2656 = vst [vmem:[#allocation7 + $0x68] sm:$0xff] %v2332
    %2657 = vst [vmem:[#allocation7 + $0x70] sm:$0xff] %v2487
    %2658 = vst [vmem:[#allocation7 + $0x78] sm:$0xff] %v2642
    // Predicated region
    $region18: #{tpu_custom_call.1} parent=1 // pred_check
      _
    $region19: #{tpu_custom_call.1} parent=1 // pred_check_branch
      %2660 = sbr.rel (0) target = $region21
    $region20: #{tpu_custom_call.1} parent=1 // pred_region
      %2662 = vsyncadd [#allocation4], 0
      %s2663 = sshll.u32 [#allocation7], 4
      %s2664 = int_to_ptr.vmem [resolvable:$true] %s2663
      %s2665 = sshll.u32 %s2, 4
      %s2666 = int_to_ptr.hbm [resolvable:$true] %s2665
      %2671 = dma.vmem_to_hbm [thread:$0]  %s2664, 2048, %s2666, [#allocation4], 128, 128, 8
    $region21: #{tpu_custom_call.1} parent=1 // pred_fallthru
      _
    // Predicated region
    $region22: #{tpu_custom_call.1} parent=1 // pred_check
      _
    $region23: #{tpu_custom_call.1} parent=1 // pred_check_branch
      %2673 = sbr.rel (0) target = $region25
    $region24: #{tpu_custom_call.1} parent=1 // pred_region
      %2675 = dma.done [#allocation4], 2048
    $region25: #{tpu_custom_call.1} parent=1 // pred_fallthru
      _
    %2676 = vsyncpa [#allocation3], 1
    %2677 = vsyncpa [#allocation6], 1
    %2678 = vsyncpa [#allocation4], 1

</llo_original>
